<compile_context>
chip_gen: v5e
topology: v5e:2x2
jax: 0.10.0
libtpu: 0.0.40
codegen_flags: <defaults>
</compile_context>

<pallas_src>
from functools import partial

import jax
import jax.numpy as jnp
import numpy as np
from jax.experimental import pallas as pl
from jax.experimental.pallas import tpu as pltpu


def _att_head_kernel(p_ref,                 # SMEM (1,)            GeM exponent p
                     x_ref,                 # VMEM (F, M, C) f32   M = B*Tc, C lane-dense
                     wd_ref, bd_ref,        # (C, H) bf16, (1, H) f32      dense Linear
                     wp_ref, bp_ref,        # (H, 2*Npad) bf16, (1, 2*Npad) f32  fused att|fix
                     *out_refs):            # logits (B,Npad), clip (B,Npad)[, fs (M,Npad), ta (M,Npad)]
    logits_ref, clip_ref = out_refs[0], out_refs[1]
    fs_ref = out_refs[2] if len(out_refs) > 2 else None
    ta_ref = out_refs[3] if len(out_refs) > 3 else None

    eps = 1e-6
    p = p_ref[0]
    m = x_ref.shape[1]
    n_batch = logits_ref.shape[0]
    t_c = m // n_batch
    n_pad = wp_ref.shape[1] // 2

    # ---- GeMFreq: (mean_F clamp(x, eps)^p)^(1/p), reduce over leading F axis ----
    x = x_ref[...]                                           # (F, M, C) f32
    xc = jnp.maximum(x, eps)
    xp = jnp.exp(p * jnp.log(xc))                            # x^p (x > 0, exact)
    pooled = jnp.mean(xp, axis=0)                            # (M, C)
    feat = jnp.exp(jnp.log(pooled) / p)                      # (M, C) — already the matmul LHS

    # ---- dense_layers (Dropout = identity in eval): Linear + ReLU ----
    # bf16 MXU operands, f32 accumulation; bias add / ReLU in f32.
    h = jnp.dot(feat.astype(wd_ref.dtype), wd_ref[...],
                preferred_element_type=jnp.float32) + bd_ref[...]
    h = jnp.maximum(h, 0.0)                                  # (M, H) f32

    # ---- fused attention | fix_scale projection (Conv1d k=1 == matmul) ----
    proj = jnp.dot(h.astype(wp_ref.dtype), wp_ref[...],
                   preferred_element_type=jnp.float32) + bp_ref[...]   # (M, 2*Npad)
    time_att = jnp.tanh(proj[:, :n_pad])                     # (M, Npad)
    fs = proj[:, n_pad:]                                     # (M, Npad)

    if fs_ref is not None:
        fs_ref[...] = fs                                     # lane-dense (8,512) slab
    if ta_ref is not None:
        ta_ref[...] = time_att

    # ---- per-batch softmax over time + attention-weighted sums ----
    # B is a tiny static int; static row slices avoid any in-kernel reshape.
    for b in range(n_batch):
        rows = slice(b * t_c, (b + 1) * t_c)
        ta_b = time_att[rows]                                # (Tc, Npad)
        fs_b = fs[rows]                                      # (Tc, Npad)
        mx = jnp.max(ta_b, axis=0, keepdims=True)
        e = jnp.exp(ta_b - mx)
        inv = pl.reciprocal(jnp.sum(e, axis=0, keepdims=True), approx=True)  # EUP
        att = e * inv                                        # softmax over time, per class
        logits_ref[b:b + 1, :] = jnp.sum(fs_b * att, axis=0, keepdims=True)
        clip_ref[b:b + 1, :] = jnp.sum(jax.nn.sigmoid(fs_b) * att, axis=0, keepdims=True)


def prep_head_params(raw, *, num_class, n_pad=None, weight_dtype=jnp.bfloat16):
    """Pack PyTorch-layout AttHead params for the kernel.

    raw (float32, torch shapes):
      p (1,); w_dense (512, C) / b_dense (512,)  [nn.Linear(in_chans, 512)];
      w_att / w_fix (N, 512, 1), b_att / b_fix (N,)  [nn.Conv1d(512, N, 1)].

    Returns weights transposed to (in, out), class dim zero-padded to a multiple
    of 128 (397 -> 512), attention+fix_scale fused along the output dim, and
    matmul weights cast to bf16 (biases stay f32).
    """
    H = raw["w_dense"].shape[0]
    N = num_class
    if n_pad is None:
        n_pad = ((N + 127) // 128) * 128
    pad = n_pad - N

    wd = jnp.asarray(raw["w_dense"]).T                       # (C, H)
    bd = jnp.asarray(raw["b_dense"]).reshape(1, H)
    wa = jnp.pad(jnp.asarray(raw["w_att"])[:, :, 0].T, ((0, 0), (0, pad)))   # (H, Npad)
    wf = jnp.pad(jnp.asarray(raw["w_fix"])[:, :, 0].T, ((0, 0), (0, pad)))
    ba = jnp.pad(jnp.asarray(raw["b_att"]).reshape(1, N), ((0, 0), (0, pad)))
    bf = jnp.pad(jnp.asarray(raw["b_fix"]).reshape(1, N), ((0, 0), (0, pad)))

    return {
        "p": jnp.asarray(raw["p"], jnp.float32),
        "w_dense": wd.astype(weight_dtype),
        "b_dense": bd.astype(jnp.float32),
        "w_proj": jnp.concatenate([wa, wf], axis=1).astype(weight_dtype),  # (H, 2*Npad)
        "b_proj": jnp.concatenate([ba, bf], axis=1).astype(jnp.float32),   # (1, 2*Npad)
    }


@partial(jax.jit, static_argnames=("num_class", "train_period", "infer_period",
                                   "training", "return_framewise"))
def att_model_forward(x, params, *, num_class, train_period=15.0, infer_period=5.0,
                      training=False, return_framewise=True):
    """x: backbone feature map feats[-1], NCHW = (B, C, F, T), float32."""
    B, C, Fdim, T = x.shape
    n_pad = params["w_proj"].shape[1] // 2

    if training or train_period == infer_period:
        start, end = 0, T
    else:
        start = int(T / 2 - T * (infer_period / train_period) / 2)
        end = int(start + T * (infer_period / train_period))
    Tc = end - start
    M = B * Tc

    # Crop + relayout in ONE fused XLA copy: (B, C, F, T) -> (F, B*Tc, C).
    # The GeM output then lands directly as the folded (M, C) matmul LHS.
    xr = jnp.transpose(x[:, :, :, start:end], (2, 0, 3, 1)).reshape(Fdim, M, C)

    vmem = pl.BlockSpec(memory_space=pltpu.MemorySpace.VMEM)
    smem = pl.BlockSpec(memory_space=pltpu.MemorySpace.SMEM)

    out_shape = [
        jax.ShapeDtypeStruct((B, n_pad), jnp.float32),       # logits (padded classes)
        jax.ShapeDtypeStruct((B, n_pad), jnp.float32),       # clipwise_pred
    ]
    if return_framewise:
        out_shape += [
            jax.ShapeDtypeStruct((M, n_pad), jnp.float32),   # fix_scale(feat) slab
            jax.ShapeDtypeStruct((M, n_pad), jnp.float32),   # time_att slab
        ]
    out_shape = tuple(out_shape)
    out_specs = tuple(vmem for _ in out_shape)

    outs = pl.pallas_call(
        _att_head_kernel,
        out_shape=out_shape,
        in_specs=[smem, vmem, vmem, vmem, vmem, vmem],
        out_specs=out_specs,
    )(params["p"], xr,
      params["w_dense"], params["b_dense"],
      params["w_proj"], params["b_proj"])

    N = num_class
    logits = outs[0][:, :N]
    clip = outs[1][:, :N]
    if not return_framewise:
        return logits, clip
    fs = outs[2].reshape(B, Tc, n_pad)[:, :, :N]
    ta = outs[3].reshape(B, Tc, n_pad)[:, :, :N]
    # (logits, clipwise_pred, fix_scale(feat).permute(0,2,1), time_att.permute(0,2,1))
    return logits, clip, fs, ta


def _reference(x, raw, *, train_period=15.0, infer_period=5.0, training=False,
               weight_dtype=jnp.bfloat16):
    """Pure-JAX mirror of AttHead.forward (eval mode).

    Matmul operands are rounded to `weight_dtype` exactly like the kernel's MXU
    inputs (bf16 weight storage is a deliberate perf choice per the review);
    everything else is f32.
    """
    eps = 1e-6
    p = raw["p"][0]
    wd = raw["w_dense"].T.astype(weight_dtype)               # (C, H)
    bd = raw["b_dense"][None, None, :]
    wa = raw["w_att"][:, :, 0].T.astype(weight_dtype)        # (H, N)
    ba = raw["b_att"][None, None, :]
    wf = raw["w_fix"][:, :, 0].T.astype(weight_dtype)
    bf = raw["b_fix"][None, None, :]

    pooled = jnp.mean(jnp.maximum(x, eps) ** p, axis=2) ** (1.0 / p)   # (B, C, T)
    feat = jnp.transpose(pooled, (0, 2, 1))                            # (B, T, C)
    h = jax.nn.relu(jnp.dot(feat.astype(weight_dtype), wd,
                            preferred_element_type=jnp.float32) + bd)  # (B, T, H)
    time_att = jnp.tanh(jnp.dot(h.astype(weight_dtype), wa,
                                preferred_element_type=jnp.float32) + ba)  # (B, T, N)
    T = x.shape[-1]
    if training or train_period == infer_period:
        start, end = 0, T
    else:
        start = int(T / 2 - T * (infer_period / train_period) / 2)
        end = int(start + T * (infer_period / train_period))
    h = h[:, start:end]
    time_att = time_att[:, start:end]
    fs = jnp.dot(h.astype(weight_dtype), wf,
                 preferred_element_type=jnp.float32) + bf              # (B, Tc, N)
    att = jax.nn.softmax(time_att, axis=1)                             # softmax over time
    logits = jnp.sum(fs * att, axis=1)
    clip = jnp.sum(jax.nn.sigmoid(fs) * att, axis=1)
    return logits, clip, fs, time_att


if __name__ == "__main__":
    key = jax.random.PRNGKey(0)
    # Small backbone-feature shapes; head hidden=512 is hard-coded in AttHead,
    # num_class=397 is the module default.
    B, C, Fdim, T = 2, 32, 8, 12
    H, N = 512, 397
    ks = jax.random.split(key, 8)

    # Backbone features are post-ReLU -> non-negative.
    x = jax.random.uniform(ks[0], (B, C, Fdim, T), dtype=jnp.float32)

    # Raw params in PyTorch layout (Linear: (out,in), Conv1d k=1: (out,in,1)).
    raw = {
        "p": jnp.array([3.0], jnp.float32),                               # GeMFreq p
        "w_dense": 0.05 * jax.random.normal(ks[1], (H, C), jnp.float32),  # Linear(in, 512)
        "b_dense": 0.05 * jax.random.normal(ks[2], (H,), jnp.float32),
        "w_att": 0.05 * jax.random.normal(ks[3], (N, H, 1), jnp.float32), # Conv1d 512->N
        "b_att": 0.05 * jax.random.normal(ks[4], (N,), jnp.float32),
        "w_fix": 0.05 * jax.random.normal(ks[5], (N, H, 1), jnp.float32), # Conv1d 512->N
        "b_fix": 0.05 * jax.random.normal(ks[6], (N,), jnp.float32),
    }
    params = prep_head_params(raw, num_class=N)   # pad 397->512, fuse att|fix, bf16 weights

    outs = att_model_forward(x, params, num_class=N,
                             train_period=15.0, infer_period=5.0, training=False)
    outs = jax.block_until_ready(outs)

    refs = _reference(x, raw, train_period=15.0, infer_period=5.0, training=False)
    # Tolerance covers bf16 MXU operands + the approx EUP reciprocal in the softmax.
    for o, r in zip(outs, refs):
        np.testing.assert_allclose(np.asarray(o), np.asarray(r), rtol=5e-3, atol=5e-3)

    # Inference-only variant: skip the fs / time_att writeback entirely.
    logits2, clip2 = jax.block_until_ready(
        att_model_forward(x, params, num_class=N, train_period=15.0, infer_period=5.0,
                          training=False, return_framewise=False))
    np.testing.assert_allclose(np.asarray(logits2), np.asarray(refs[0]), rtol=5e-3, atol=5e-3)
    np.testing.assert_allclose(np.asarray(clip2), np.asarray(refs[1]), rtol=5e-3, atol=5e-3)

    print("KERNEL_OK")
</pallas_src>

<mosaic_0001>
module attributes {stable_mosaic.version = 11 : i64} {
  func.func @_att_head_kernel(%arg0: memref<1xf32, #tpu.memory_space<smem>>, %arg1: memref<8x8x32xf32, #tpu.memory_space<vmem>>, %arg2: memref<32x512xbf16, #tpu.memory_space<vmem>>, %arg3: memref<1x512xf32, #tpu.memory_space<vmem>>, %arg4: memref<512x1024xbf16, #tpu.memory_space<vmem>>, %arg5: memref<1x1024xf32, #tpu.memory_space<vmem>>, %arg6: memref<2x512xf32, #tpu.memory_space<vmem>>, %arg7: memref<2x512xf32, #tpu.memory_space<vmem>>, %arg8: memref<8x512xf32, #tpu.memory_space<vmem>>, %arg9: memref<8x512xf32, #tpu.memory_space<vmem>>) attributes {dimension_semantics = [], scalar_prefetch = 0 : i64, scratch_operands = 0 : i64, tpu.core_type = #tpu.core_type<tc>} {
    %c0 = arith.constant 0 : index
    %0 = memref.load %arg0[%c0] : memref<1xf32, #tpu.memory_space<smem>>
    %c0_0 = arith.constant 0 : index
    %c0_1 = arith.constant 0 : index
    %c0_2 = arith.constant 0 : index
    %1 = vector.load %arg1[%c0_0, %c0_1, %c0_2] : memref<8x8x32xf32, #tpu.memory_space<vmem>>, vector<8x8x32xf32>
    %cst = arith.constant 9.99999997E-7 : f32
    %2 = vector.broadcast %cst : f32 to vector<8x8x32xf32>
    %3 = arith.maximumf %1, %2 : vector<8x8x32xf32>
    %4 = math.log %3 : vector<8x8x32xf32>
    %5 = vector.broadcast %0 : f32 to vector<8x8x32xf32>
    %6 = arith.mulf %5, %4 : vector<8x8x32xf32>
    %7 = math.exp %6 : vector<8x8x32xf32>
    %cst_3 = arith.constant dense<0.000000e+00> : vector<8x32xf32>
    %8 = vector.multi_reduction <add>, %7, %cst_3 [0] : vector<8x8x32xf32> to vector<8x32xf32>
    %cst_4 = arith.constant 8.000000e+00 : f32
    %9 = vector.broadcast %cst_4 : f32 to vector<8x32xf32>
    %10 = arith.divf %8, %9 : vector<8x32xf32>
    %11 = math.log %10 : vector<8x32xf32>
    %12 = vector.broadcast %0 : f32 to vector<8x32xf32>
    %13 = arith.divf %11, %12 : vector<8x32xf32>
    %14 = math.exp %13 : vector<8x32xf32>
    %15 = arith.truncf %14 : vector<8x32xf32> to vector<8x32xbf16>
    %c0_5 = arith.constant 0 : index
    %c0_6 = arith.constant 0 : index
    %16 = vector.load %arg2[%c0_5, %c0_6] : memref<32x512xbf16, #tpu.memory_space<vmem>>, vector<32x512xbf16>
    %cst_7 = arith.constant dense<0.000000e+00> : vector<8x512xf32>
    %17 = tpu.matmul %15, %16, %cst_7 {dimension_numbers = #tpu.dot_dimension_numbers<[1], [0], [0], [1], [0, 0, 1, 1], [], []>} : vector<8x32xbf16>, vector<32x512xbf16>, vector<8x512xf32> -> vector<8x512xf32>
    %c0_8 = arith.constant 0 : index
    %c0_9 = arith.constant 0 : index
    %18 = vector.load %arg3[%c0_8, %c0_9] : memref<1x512xf32, #tpu.memory_space<vmem>>, vector<1x512xf32>
    %19 = vector.broadcast %18 : vector<1x512xf32> to vector<8x512xf32>
    %20 = arith.addf %17, %19 : vector<8x512xf32>
    %cst_10 = arith.constant 0.000000e+00 : f32
    %21 = vector.broadcast %cst_10 : f32 to vector<8x512xf32>
    %22 = arith.maximumf %20, %21 : vector<8x512xf32>
    %23 = arith.truncf %22 : vector<8x512xf32> to vector<8x512xbf16>
    %c0_11 = arith.constant 0 : index
    %c0_12 = arith.constant 0 : index
    %24 = vector.load %arg4[%c0_11, %c0_12] : memref<512x1024xbf16, #tpu.memory_space<vmem>>, vector<512x1024xbf16>
    %cst_13 = arith.constant dense<0.000000e+00> : vector<8x1024xf32>
    %25 = tpu.matmul %23, %24, %cst_13 {dimension_numbers = #tpu.dot_dimension_numbers<[1], [0], [0], [1], [0, 0, 1, 1], [], []>} : vector<8x512xbf16>, vector<512x1024xbf16>, vector<8x1024xf32> -> vector<8x1024xf32>
    %c0_14 = arith.constant 0 : index
    %c0_15 = arith.constant 0 : index
    %26 = vector.load %arg5[%c0_14, %c0_15] : memref<1x1024xf32, #tpu.memory_space<vmem>>, vector<1x1024xf32>
    %27 = vector.broadcast %26 : vector<1x1024xf32> to vector<8x1024xf32>
    %28 = arith.addf %25, %27 : vector<8x1024xf32>
    %29 = vector.extract_strided_slice %28 {offsets = [0, 0], sizes = [8, 512], strides = [1, 1]} : vector<8x1024xf32> to vector<8x512xf32>
    %30 = math.tanh %29 : vector<8x512xf32>
    %31 = vector.extract_strided_slice %28 {offsets = [0, 512], sizes = [8, 512], strides = [1, 1]} : vector<8x1024xf32> to vector<8x512xf32>
    %c0_16 = arith.constant 0 : index
    %c0_17 = arith.constant 0 : index
    %32 = vector.load %arg8[%c0_16, %c0_17] : memref<8x512xf32, #tpu.memory_space<vmem>>, vector<8x512xf32>
    tpu.vector_store %arg8[%c0_16, %c0_17], %31 {strides = array<i32>} : memref<8x512xf32, #tpu.memory_space<vmem>>, vector<8x512xf32>,
    %c0_18 = arith.constant 0 : index
    %c0_19 = arith.constant 0 : index
    %33 = vector.load %arg9[%c0_18, %c0_19] : memref<8x512xf32, #tpu.memory_space<vmem>>, vector<8x512xf32>
    tpu.vector_store %arg9[%c0_18, %c0_19], %30 {strides = array<i32>} : memref<8x512xf32, #tpu.memory_space<vmem>>, vector<8x512xf32>,
    %34 = vector.extract_strided_slice %30 {offsets = [0, 0], sizes = [4, 512], strides = [1, 1]} : vector<8x512xf32> to vector<4x512xf32>
    %35 = vector.extract_strided_slice %31 {offsets = [0, 0], sizes = [4, 512], strides = [1, 1]} : vector<8x512xf32> to vector<4x512xf32>
    %cst_20 = arith.constant dense<0xFF800000> : vector<512xf32>
    %36 = vector.multi_reduction <maximumf>, %34, %cst_20 [0] : vector<4x512xf32> to vector<512xf32>
    %37 = vector.shape_cast %36 : vector<512xf32> to vector<1x512xf32>
    %38 = vector.broadcast %37 : vector<1x512xf32> to vector<4x512xf32>
    %39 = arith.subf %34, %38 : vector<4x512xf32>
    %40 = math.exp %39 : vector<4x512xf32>
    %cst_21 = arith.constant dense<0.000000e+00> : vector<512xf32>
    %41 = vector.multi_reduction <add>, %40, %cst_21 [0] : vector<4x512xf32> to vector<512xf32>
    %42 = vector.shape_cast %41 : vector<512xf32> to vector<1x512xf32>
    %43 = tpu.reciprocal %42 {approx = true} : vector<1x512xf32> -> vector<1x512xf32>
    %44 = vector.broadcast %43 : vector<1x512xf32> to vector<4x512xf32>
    %45 = arith.mulf %40, %44 : vector<4x512xf32>
    %46 = arith.mulf %35, %45 : vector<4x512xf32>
    %cst_22 = arith.constant dense<0.000000e+00> : vector<512xf32>
    %47 = vector.multi_reduction <add>, %46, %cst_22 [0] : vector<4x512xf32> to vector<512xf32>
    %48 = vector.shape_cast %47 : vector<512xf32> to vector<1x512xf32>
    %c0_23 = arith.constant 0 : index
    %c0_24 = arith.constant 0 : index
    %49 = vector.load %arg6[%c0_23, %c0_24] : memref<2x512xf32, #tpu.memory_space<vmem>>, vector<1x512xf32>
    tpu.vector_store %arg6[%c0_23, %c0_24], %48 {strides = array<i32>} : memref<2x512xf32, #tpu.memory_space<vmem>>, vector<1x512xf32>,
    %50 = arith.negf %35 : vector<4x512xf32>
    %51 = math.exp %50 : vector<4x512xf32>
    %cst_25 = arith.constant 1.000000e+00 : f32
    %52 = vector.broadcast %cst_25 : f32 to vector<4x512xf32>
    %53 = arith.addf %52, %51 : vector<4x512xf32>
    %54 = arith.divf %52, %53 : vector<4x512xf32>
    %55 = arith.mulf %54, %45 : vector<4x512xf32>
    %cst_26 = arith.constant dense<0.000000e+00> : vector<512xf32>
    %56 = vector.multi_reduction <add>, %55, %cst_26 [0] : vector<4x512xf32> to vector<512xf32>
    %57 = vector.shape_cast %56 : vector<512xf32> to vector<1x512xf32>
    %c0_27 = arith.constant 0 : index
    %c0_28 = arith.constant 0 : index
    %58 = vector.load %arg7[%c0_27, %c0_28] : memref<2x512xf32, #tpu.memory_space<vmem>>, vector<1x512xf32>
    tpu.vector_store %arg7[%c0_27, %c0_28], %57 {strides = array<i32>} : memref<2x512xf32, #tpu.memory_space<vmem>>, vector<1x512xf32>,
    %59 = vector.extract_strided_slice %30 {offsets = [4, 0], sizes = [4, 512], strides = [1, 1]} : vector<8x512xf32> to vector<4x512xf32>
    %60 = vector.extract_strided_slice %31 {offsets = [4, 0], sizes = [4, 512], strides = [1, 1]} : vector<8x512xf32> to vector<4x512xf32>
    %cst_29 = arith.constant dense<0xFF800000> : vector<512xf32>
    %61 = vector.multi_reduction <maximumf>, %59, %cst_29 [0] : vector<4x512xf32> to vector<512xf32>
    %62 = vector.shape_cast %61 : vector<512xf32> to vector<1x512xf32>
    %63 = vector.broadcast %62 : vector<1x512xf32> to vector<4x512xf32>
    %64 = arith.subf %59, %63 : vector<4x512xf32>
    %65 = math.exp %64 : vector<4x512xf32>
    %cst_30 = arith.constant dense<0.000000e+00> : vector<512xf32>
    %66 = vector.multi_reduction <add>, %65, %cst_30 [0] : vector<4x512xf32> to vector<512xf32>
    %67 = vector.shape_cast %66 : vector<512xf32> to vector<1x512xf32>
    %68 = tpu.reciprocal %67 {approx = true} : vector<1x512xf32> -> vector<1x512xf32>
    %69 = vector.broadcast %68 : vector<1x512xf32> to vector<4x512xf32>
    %70 = arith.mulf %65, %69 : vector<4x512xf32>
    %71 = arith.mulf %60, %70 : vector<4x512xf32>
    %cst_31 = arith.constant dense<0.000000e+00> : vector<512xf32>
    %72 = vector.multi_reduction <add>, %71, %cst_31 [0] : vector<4x512xf32> to vector<512xf32>
    %73 = vector.shape_cast %72 : vector<512xf32> to vector<1x512xf32>
    %c1 = arith.constant 1 : index
    %c0_32 = arith.constant 0 : index
    %74 = vector.load %arg6[%c1, %c0_32] : memref<2x512xf32, #tpu.memory_space<vmem>>, vector<1x512xf32>
    tpu.vector_store %arg6[%c1, %c0_32], %73 {strides = array<i32>} : memref<2x512xf32, #tpu.memory_space<vmem>>, vector<1x512xf32>,
    %75 = arith.negf %60 : vector<4x512xf32>
    %76 = math.exp %75 : vector<4x512xf32>
    %cst_33 = arith.constant 1.000000e+00 : f32
    %77 = vector.broadcast %cst_33 : f32 to vector<4x512xf32>
    %78 = arith.addf %77, %76 : vector<4x512xf32>
    %79 = arith.divf %77, %78 : vector<4x512xf32>
    %80 = arith.mulf %79, %70 : vector<4x512xf32>
    %cst_34 = arith.constant dense<0.000000e+00> : vector<512xf32>
    %81 = vector.multi_reduction <add>, %80, %cst_34 [0] : vector<4x512xf32> to vector<512xf32>
    %82 = vector.shape_cast %81 : vector<512xf32> to vector<1x512xf32>
    %c1_35 = arith.constant 1 : index
    %c0_36 = arith.constant 0 : index
    %83 = vector.load %arg7[%c1_35, %c0_36] : memref<2x512xf32, #tpu.memory_space<vmem>>, vector<1x512xf32>
    tpu.vector_store %arg7[%c1_35, %c0_36], %82 {strides = array<i32>} : memref<2x512xf32, #tpu.memory_space<vmem>>, vector<1x512xf32>,
    return
  }
}

</mosaic_0001>

<llo_original>
// kernel: att_model_forward.1
$region0: #{att_model_forward.1}
  #allocation0 [shape = 'u32[]', space=smem, size = 0x4, offset = 0x4, fixed_abs, tag = 'smem constant byte address 0x4 - core index']
  #allocation1 [shape = 'u32[72,128]{1,0:T(1,128)}', space=vmem, size = 0x9000, scoped, tag = 'internal scratch']
  #allocation2 [shape = 'f32[1]{0:T(128)S(6)}', space=smem, size = 0x200, scoped, tag = 'scoped memory for att_model_forward.1']
  %s0 = inlined_call_operand.<no memory space> [shape: f32[1], index: 0, kind: input, shape index: {}]
  %s1 = inlined_call_operand.vmem [shape: f32[8,8,32], index: 1, kind: input, shape index: {}]
  %s2 = inlined_call_operand.vmem [shape: bf16[32,512], index: 2, kind: input, shape index: {}]
  %s3 = inlined_call_operand.vmem [shape: f32[1,512], index: 3, kind: input, shape index: {}]
  %s4 = inlined_call_operand.hbm [shape: bf16[512,1024], index: 4, kind: input, shape index: {}]
  %s5 = inlined_call_operand.vmem [shape: f32[1,1024], index: 5, kind: input, shape index: {}]
  %s6 = inlined_call_operand.hbm [shape: f32[2,512], index: 6, kind: output, shape index: {0}]
  %s7 = inlined_call_operand.hbm [shape: f32[2,512], index: 7, kind: output, shape index: {1}]
  %s8 = inlined_call_operand.vmem [shape: f32[8,512], index: 8, kind: output, shape index: {2}]
  %s9 = inlined_call_operand.vmem [shape: f32[8,512], index: 9, kind: output, shape index: {3}]
  %10 = xla_tuple %s6, %s7, %s8, %s9
  %s11 = sld [smem:[#allocation0]]
  $region62: #{att_model_forward.1} parent=0
    _
  %s13 = ssub.s32 1, %s11
  %s14 = scalar_select 0, %s13, %s11
  %15 = sst [smem:[#allocation2]] %s0
  $region1: #{att_model_forward.1} parent=0
    #allocation3 [shape = 'u8[1048576]{0}', space=vmem, size = 0x100000, scoped, tag = 'input window, operand 4, single buffered']
    #allocation4 [shape = 's32[1]{0}', space=sflag, size = 0x4, scoped, tag = 'scoped memory for att_model_forward.1']
    #allocation5 [shape = 's32[1]{0}', space=sflag, size = 0x4, scoped, tag = 'scoped memory for att_model_forward.1']
    #allocation6 [shape = 'u8[4096]{0}', space=vmem, size = 0x1000, scoped, tag = 'output window, operand 0, single buffered']
    #allocation7 [shape = 'u8[4096]{0}', space=vmem, size = 0x1000, scoped, tag = 'output window, operand 1, single buffered']
    #allocation8 [shape = 's32[1]{0}', space=sflag, size = 0x4, scoped, tag = 'scoped memory for att_model_forward.1']
    %16 = vsyncpa [#allocation4], 0
    %17 = vsyncpa [#allocation5], 0
    %18 = vsyncpa [#allocation8], 0
    // Predicated region
    $region2: #{att_model_forward.1} parent=1 // pred_check
      _
    $region3: #{att_model_forward.1} parent=1 // pred_check_branch
      %20 = sbr.rel (0) target = $region5
    $region4: #{att_model_forward.1} parent=1 // pred_region
      _
    $region5: #{att_model_forward.1} parent=1 // pred_fallthru
      _
    // Predicated region
    $region6: #{att_model_forward.1} parent=1 // pred_check
      _
    $region7: #{att_model_forward.1} parent=1 // pred_check_branch
      %22 = sbr.rel (0) target = $region9
    $region8: #{att_model_forward.1} parent=1 // pred_region
      _
    $region9: #{att_model_forward.1} parent=1 // pred_fallthru
      _
    // Predicated region
    $region10: #{att_model_forward.1} parent=1 // pred_check
      _
    $region11: #{att_model_forward.1} parent=1 // pred_check_branch
      %24 = sbr.rel (0) target = $region13
    $region12: #{att_model_forward.1} parent=1 // pred_region
      _
    $region13: #{att_model_forward.1} parent=1 // pred_fallthru
      _
    // Predicated region
    $region14: #{att_model_forward.1} parent=1 // pred_check
      _
    $region15: #{att_model_forward.1} parent=1 // pred_check_branch
      %26 = sbr.rel (0) target = $region17
    $region16: #{att_model_forward.1} parent=1 // pred_region
      _
    $region17: #{att_model_forward.1} parent=1 // pred_fallthru
      _
    // Predicated region
    $region18: #{att_model_forward.1} parent=1 // pred_check
      _
    $region19: #{att_model_forward.1} parent=1 // pred_check_branch
      %28 = sbr.rel (0) target = $region21
    $region20: #{att_model_forward.1} parent=1 // pred_region
      %30 = vsyncadd [#allocation4], 0
      %s31 = sshll.u32 %s4, 4
      %s32 = int_to_ptr.hbm [resolvable:$true] %s31
      %s33 = sshll.u32 [#allocation3], 4
      %s34 = int_to_ptr.vmem [resolvable:$true] %s33
      %39 = dma.hbm_to_vmem [thread:$0]  %s32, 32768, %s34, [#allocation4], 512, 512, 32
    $region21: #{att_model_forward.1} parent=1 // pred_fallthru
      _
    // Predicated region
    $region22: #{att_model_forward.1} parent=1 // pred_check
      _
    $region23: #{att_model_forward.1} parent=1 // pred_check_branch
      %41 = sbr.rel (0) target = $region25
    $region24: #{att_model_forward.1} parent=1 // pred_region
      _
    $region25: #{att_model_forward.1} parent=1 // pred_fallthru
      _
    // Predicated region
    $region26: #{att_model_forward.1} parent=1 // pred_check
      _
    $region27: #{att_model_forward.1} parent=1 // pred_check_branch
      %43 = sbr.rel (0) target = $region29
    $region28: #{att_model_forward.1} parent=1 // pred_region
      %45 = dma.done [#allocation4], 32768
    $region29: #{att_model_forward.1} parent=1 // pred_fallthru
      _
    %s47 = sld [smem:[#allocation2]]
    %v48 = vld [vmem:[%s1] sm:$0xff]
    %v49 = vld [vmem:[%s1 + $0x8] sm:$0xff]
    %v50 = vld [vmem:[%s1 + $0x10] sm:$0xff]
    %v51 = vld [vmem:[%s1 + $0x18] sm:$0xff]
    %v52 = vld [vmem:[%s1 + $0x20] sm:$0xff]
    %v53 = vld [vmem:[%s1 + $0x28] sm:$0xff]
    %v54 = vld [vmem:[%s1 + $0x30] sm:$0xff]
    %v55 = vld [vmem:[%s1 + $0x38] sm:$0xff]
    %v56 = vmax.f32 %v48, 1e-06
    %v57 = vmax.f32 %v49, 1e-06
    %v58 = vmax.f32 %v50, 1e-06
    %v59 = vmax.f32 %v51, 1e-06
    %v60 = vmax.f32 %v52, 1e-06
    %v61 = vmax.f32 %v53, 1e-06
    %v62 = vmax.f32 %v54, 1e-06
    %v63 = vmax.f32 %v55, 1e-06
    %v64 = vlog2.pop %v56
    %v65 = vmul.f32 %v64, 0.6931472
    %v66 = vlog2.pop %v57
    %v67 = vmul.f32 %v66, 0.6931472
    %v68 = vlog2.pop %v58
    %v69 = vmul.f32 %v68, 0.6931472
    %v70 = vlog2.pop %v59
    %v71 = vmul.f32 %v70, 0.6931472
    %v72 = vlog2.pop %v60
    %v73 = vmul.f32 %v72, 0.6931472
    %v74 = vlog2.pop %v61
    %v75 = vmul.f32 %v74, 0.6931472
    %v76 = vlog2.pop %v62
    %v77 = vmul.f32 %v76, 0.6931472
    %v78 = vlog2.pop %v63
    %v79 = vmul.f32 %v78, 0.6931472
    %v80 = vstv %s47
    %v81 = vmul.f32 %v80, %v65
    %v82 = vmul.f32 %v80, %v67
    %v83 = vmul.f32 %v80, %v69
    %v84 = vmul.f32 %v80, %v71
    %v85 = vmul.f32 %v80, %v73
    %v86 = vmul.f32 %v80, %v75
    %v87 = vmul.f32 %v80, %v77
    %v88 = vmul.f32 %v80, %v79
    %v89 = vmul.f32 %v81, 1.442695
    %v90 = vpow.pop %v89
    %v91 = vmul.f32 %v82, 1.442695
    %v92 = vpow.pop %v91
    %v93 = vmul.f32 %v83, 1.442695
    %v94 = vpow.pop %v93
    %v95 = vmul.f32 %v84, 1.442695
    %v96 = vpow.pop %v95
    %v97 = vmul.f32 %v85, 1.442695
    %v98 = vpow.pop %v97
    %v99 = vmul.f32 %v86, 1.442695
    %v100 = vpow.pop %v99
    %v101 = vmul.f32 %v87, 1.442695
    %v102 = vpow.pop %v101
    %v103 = vmul.f32 %v88, 1.442695
    %v104 = vpow.pop %v103
    %vm105 = vcmask 261120
    %v106 = vsel %vm105, %v90, 0.0
    %v107 = vsel %vm105, %v92, 0.0
    %v108 = vadd.f32 %v106, %v107
    %v109 = vsel %vm105, %v94, 0.0
    %v110 = vadd.f32 %v108, %v109
    %v111 = vsel %vm105, %v96, 0.0
    %v112 = vadd.f32 %v110, %v111
    %v113 = vsel %vm105, %v98, 0.0
    %v114 = vadd.f32 %v112, %v113
    %v115 = vsel %vm105, %v100, 0.0
    %v116 = vadd.f32 %v114, %v115
    %v117 = vsel %vm105, %v102, 0.0
    %v118 = vadd.f32 %v116, %v117
    %v119 = vsel %vm105, %v104, 0.0
    %v120 = vadd.f32 %v118, %v119
    %v121 = vrcp.pop 8.0
    %v122 = vmul.f32 8.0, %v121
    %v123 = vsub.f32 1.0, %v122
    %v124 = vmul.f32 %v121, %v123
    %v125 = vadd.f32 %v121, %v124
    %vm126 = vweird.f32 %v121
    %v127 = vsel %vm126, %v121, %v125
    %v128 = vmul.f32 %v120, %v127
    %v129 = vlog2.pop %v128
    %v130 = vmul.f32 %v129, 0.6931472
    %v131 = vrcp.pop %v80
    %v132 = vmul.f32 %v80, %v131
    %v133 = vsub.f32 1.0, %v132
    %v134 = vmul.f32 %v131, %v133
    %v135 = vadd.f32 %v131, %v134
    %vm136 = vweird.f32 %v80
    %vm137 = vweird.f32 %v131
    %vm138 = vmor %vm136, %vm137
    %v139 = vsel %vm138, %v131, %v135
    %v140 = vand.u32 2147483647, %v80
    %vm141 = vcmp.eq.f32.partialorder %v140, 8.507059e+37
    %v142 = vand.u32 %v80, 2147483648
    %v143 = vor.u32 1.1754944e-38, %v142
    %v144 = vsel %vm141, %v143, %v139
    %v145 = vmul.f32 %v130, %v144
    %v146 = vmul.f32 %v145, 1.442695
    %v147 = vpow.pop %v146
    %v148 = vpack.c.bf16 %v147, %v147
    %v149 = vld [vmem:[%s2] sm:$0xff]
    %v150 = vld [vmem:[%s2 + $0x8] sm:$0xff]
    %v151 = vld [vmem:[%s2 + $0x10] sm:$0xff]
    %v152 = vld [vmem:[%s2 + $0x18] sm:$0xff]
    %v153 = vld [vmem:[%s2 + $0x20] sm:$0xff]
    %v154 = vld [vmem:[%s2 + $0x28] sm:$0xff]
    %v155 = vld [vmem:[%s2 + $0x30] sm:$0xff]
    %v156 = vld [vmem:[%s2 + $0x38] sm:$0xff]
    %v157 = vld [vmem:[%s3] sm:$0xf]
    %v159 = vperm.slane %v157, 0
    %v160 = vperm.slane %v157, 1
    %v161 = vperm.slane %v157, 2
    %v162 = vperm.slane %v157, 3
    %v175 = vunpack.c.l.b16 %v149
    %v176 = vunpack.c.h.b16 %v149
    %v177 = vunpack.c.l.b16 %v150
    %v178 = vunpack.c.h.b16 %v150
    %v179 = vunpack.c.l.b16 %v151
    %v180 = vunpack.c.h.b16 %v151
    %v181 = vunpack.c.l.b16 %v152
    %v182 = vunpack.c.h.b16 %v152
    %v183 = vunpack.c.l.b16 %v153
    %v184 = vunpack.c.h.b16 %v153
    %v185 = vunpack.c.l.b16 %v154
    %v186 = vunpack.c.h.b16 %v154
    %v187 = vunpack.c.l.b16 %v155
    %v188 = vunpack.c.h.b16 %v155
    %v189 = vunpack.c.l.b16 %v156
    %v190 = vunpack.c.h.b16 %v156
    %v191 = vpack.c.b16 %v179, %v175
    %v192 = vpack.c.b16 %v180, %v176
    %v193 = vpack.c.b16 %v181, %v177
    %v194 = vpack.c.b16 %v182, %v178
    %v195 = vpack.c.b16 %v187, %v183
    %v196 = vpack.c.b16 %v188, %v184
    %v197 = vpack.c.b16 %v189, %v185
    %v198 = vpack.c.b16 %v190, %v186
    %v208 = vsel %vm105, %v148, 0
    %210 = vmatpush.bf16.msra.mxu0 0
    %211 = vmatpush.bf16.msra.mxu0 0
    %212 = vmatpush.bf16.msra.mxu0 0
    %213 = vmatpush.bf16.msra.mxu0 0
    %214 = vmatpush.bf16.msra.mxu0 0
    %215 = vmatpush.bf16.msra.mxu0 0
    %216 = vmatpush.bf16.msra.mxu0 %v195
    %217 = vmatpush.bf16.msra.mxu0 %v191
    %218 = vmatmul.bf16.gmra.mxu0 %v208
    %v219 = vpop.f32.mrf.mxu0
    %v220 = vadd.f32 %v159, %v219
    %v221 = vpop.f32.mrf.mxu0
    %222 = vdwg.mxu0
    %223 = vmatpush.bf16.msra.mxu0 0
    %224 = vmatpush.bf16.msra.mxu0 0
    %225 = vmatpush.bf16.msra.mxu0 0
    %226 = vmatpush.bf16.msra.mxu0 0
    %227 = vmatpush.bf16.msra.mxu0 0
    %228 = vmatpush.bf16.msra.mxu0 0
    %229 = vmatpush.bf16.msra.mxu0 %v196
    %230 = vmatpush.bf16.msra.mxu0 %v192
    %231 = vmatmul.bf16.gmra.mxu0 %v208
    %v232 = vpop.f32.mrf.mxu0
    %v233 = vadd.f32 %v160, %v232
    %v234 = vpop.f32.mrf.mxu0
    %235 = vdwg.mxu0
    %236 = vmatpush.bf16.msra.mxu0 0
    %237 = vmatpush.bf16.msra.mxu0 0
    %238 = vmatpush.bf16.msra.mxu0 0
    %239 = vmatpush.bf16.msra.mxu0 0
    %240 = vmatpush.bf16.msra.mxu0 0
    %241 = vmatpush.bf16.msra.mxu0 0
    %242 = vmatpush.bf16.msra.mxu0 %v197
    %243 = vmatpush.bf16.msra.mxu0 %v193
    %244 = vmatmul.bf16.gmra.mxu0 %v208
    %v245 = vpop.f32.mrf.mxu0
    %v246 = vadd.f32 %v161, %v245
    %v247 = vpop.f32.mrf.mxu0
    %248 = vdwg.mxu0
    %249 = vmatpush.bf16.msra.mxu0 0
    %250 = vmatpush.bf16.msra.mxu0 0
    %251 = vmatpush.bf16.msra.mxu0 0
    %252 = vmatpush.bf16.msra.mxu0 0
    %253 = vmatpush.bf16.msra.mxu0 0
    %254 = vmatpush.bf16.msra.mxu0 0
    %255 = vmatpush.bf16.msra.mxu0 %v198
    %256 = vmatpush.bf16.msra.mxu0 %v194
    %257 = vmatmul.bf16.gmra.mxu0 %v208
    %v258 = vpop.f32.mrf.mxu0
    %v259 = vadd.f32 %v162, %v258
    %v260 = vpop.f32.mrf.mxu0
    %261 = vdwg.mxu0
    %v262 = vmax.f32 %v220, 0.0
    %v263 = vmax.f32 %v233, 0.0
    %v264 = vmax.f32 %v246, 0.0
    %v265 = vmax.f32 %v259, 0.0
    %v266 = vpack.c.bf16 %v262, %v262
    %v267 = vpack.c.bf16 %v263, %v263
    %v268 = vpack.c.bf16 %v264, %v264
    %v269 = vpack.c.bf16 %v265, %v265
    %v270 = vld [vmem:[#allocation3] sm:$0xff]
    %v271 = vld [vmem:[#allocation3 + $0x8] sm:$0xff]
    %v272 = vld [vmem:[#allocation3 + $0x10] sm:$0xff]
    %v273 = vld [vmem:[#allocation3 + $0x18] sm:$0xff]
    %v274 = vld [vmem:[#allocation3 + $0x20] sm:$0xff]
    %v275 = vld [vmem:[#allocation3 + $0x28] sm:$0xff]
    %v276 = vld [vmem:[#allocation3 + $0x30] sm:$0xff]
    %v277 = vld [vmem:[#allocation3 + $0x38] sm:$0xff]
    %v278 = vld [vmem:[#allocation3 + $0x40] sm:$0xff]
    %v279 = vld [vmem:[#allocation3 + $0x48] sm:$0xff]
    %v280 = vld [vmem:[#allocation3 + $0x50] sm:$0xff]
    %v281 = vld [vmem:[#allocation3 + $0x58] sm:$0xff]
    %v282 = vld [vmem:[#allocation3 + $0x60] sm:$0xff]
    %v283 = vld [vmem:[#allocation3 + $0x68] sm:$0xff]
    %v284 = vld [vmem:[#allocation3 + $0x70] sm:$0xff]
    %v285 = vld [vmem:[#allocation3 + $0x78] sm:$0xff]
    %v286 = vld [vmem:[#allocation3 + $0x80] sm:$0xff]
    %v287 = vld [vmem:[#allocation3 + $0x88] sm:$0xff]
    %v288 = vld [vmem:[#allocation3 + $0x90] sm:$0xff]
    %v289 = vld [vmem:[#allocation3 + $0x98] sm:$0xff]
    %v290 = vld [vmem:[#allocation3 + $0xa0] sm:$0xff]
    %v291 = vld [vmem:[#allocation3 + $0xa8] sm:$0xff]
    %v292 = vld [vmem:[#allocation3 + $0xb0] sm:$0xff]
    %v293 = vld [vmem:[#allocation3 + $0xb8] sm:$0xff]
    %v294 = vld [vmem:[#allocation3 + $0xc0] sm:$0xff]
    %v295 = vld [vmem:[#allocation3 + $0xc8] sm:$0xff]
    %v296 = vld [vmem:[#allocation3 + $0xd0] sm:$0xff]
    %v297 = vld [vmem:[#allocation3 + $0xd8] sm:$0xff]
    %v298 = vld [vmem:[#allocation3 + $0xe0] sm:$0xff]
    %v299 = vld [vmem:[#allocation3 + $0xe8] sm:$0xff]
    %v300 = vld [vmem:[#allocation3 + $0xf0] sm:$0xff]
    %v301 = vld [vmem:[#allocation3 + $0xf8] sm:$0xff]
    %v302 = vld [vmem:[#allocation3 + $0x100] sm:$0xff]
    %v303 = vld [vmem:[#allocation3 + $0x108] sm:$0xff]
    %v304 = vld [vmem:[#allocation3 + $0x110] sm:$0xff]
    %v305 = vld [vmem:[#allocation3 + $0x118] sm:$0xff]
    %v306 = vld [vmem:[#allocation3 + $0x120] sm:$0xff]
    %v307 = vld [vmem:[#allocation3 + $0x128] sm:$0xff]
    %v308 = vld [vmem:[#allocation3 + $0x130] sm:$0xff]
    %v309 = vld [vmem:[#allocation3 + $0x138] sm:$0xff]
    %v310 = vld [vmem:[#allocation3 + $0x140] sm:$0xff]
    %v311 = vld [vmem:[#allocation3 + $0x148] sm:$0xff]
    %v312 = vld [vmem:[#allocation3 + $0x150] sm:$0xff]
    %v313 = vld [vmem:[#allocation3 + $0x158] sm:$0xff]
    %v314 = vld [vmem:[#allocation3 + $0x160] sm:$0xff]
    %v315 = vld [vmem:[#allocation3 + $0x168] sm:$0xff]
    %v316 = vld [vmem:[#allocation3 + $0x170] sm:$0xff]
    %v317 = vld [vmem:[#allocation3 + $0x178] sm:$0xff]
    %v318 = vld [vmem:[#allocation3 + $0x180] sm:$0xff]
    %v319 = vld [vmem:[#allocation3 + $0x188] sm:$0xff]
    %v320 = vld [vmem:[#allocation3 + $0x190] sm:$0xff]
    %v321 = vld [vmem:[#allocation3 + $0x198] sm:$0xff]
    %v322 = vld [vmem:[#allocation3 + $0x1a0] sm:$0xff]
    %v323 = vld [vmem:[#allocation3 + $0x1a8] sm:$0xff]
    %v324 = vld [vmem:[#allocation3 + $0x1b0] sm:$0xff]
    %v325 = vld [vmem:[#allocation3 + $0x1b8] sm:$0xff]
    %v326 = vld [vmem:[#allocation3 + $0x1c0] sm:$0xff]
    %v327 = vld [vmem:[#allocation3 + $0x1c8] sm:$0xff]
    %v328 = vld [vmem:[#allocation3 + $0x1d0] sm:$0xff]
    %v329 = vld [vmem:[#allocation3 + $0x1d8] sm:$0xff]
    %v330 = vld [vmem:[#allocation3 + $0x1e0] sm:$0xff]
    %v331 = vld [vmem:[#allocation3 + $0x1e8] sm:$0xff]
    %v332 = vld [vmem:[#allocation3 + $0x1f0] sm:$0xff]
    %v333 = vld [vmem:[#allocation3 + $0x1f8] sm:$0xff]
    %v334 = vld [vmem:[#allocation3 + $0x200] sm:$0xff]
    %v335 = vld [vmem:[#allocation3 + $0x208] sm:$0xff]
    %v336 = vld [vmem:[#allocation3 + $0x210] sm:$0xff]
    %v337 = vld [vmem:[#allocation3 + $0x218] sm:$0xff]
    %v338 = vld [vmem:[#allocation3 + $0x220] sm:$0xff]
    %v339 = vld [vmem:[#allocation3 + $0x228] sm:$0xff]
    %v340 = vld [vmem:[#allocation3 + $0x230] sm:$0xff]
    %v341 = vld [vmem:[#allocation3 + $0x238] sm:$0xff]
    %v342 = vld [vmem:[#allocation3 + $0x240] sm:$0xff]
    %v343 = vld [vmem:[#allocation3 + $0x248] sm:$0xff]
    %v344 = vld [vmem:[#allocation3 + $0x250] sm:$0xff]
    %v345 = vld [vmem:[#allocation3 + $0x258] sm:$0xff]
    %v346 = vld [vmem:[#allocation3 + $0x260] sm:$0xff]
    %v347 = vld [vmem:[#allocation3 + $0x268] sm:$0xff]
    %v348 = vld [vmem:[#allocation3 + $0x270] sm:$0xff]
    %v349 = vld [vmem:[#allocation3 + $0x278] sm:$0xff]
    %v350 = vld [vmem:[#allocation3 + $0x280] sm:$0xff]
    %v351 = vld [vmem:[#allocation3 + $0x288] sm:$0xff]
    %v352 = vld [vmem:[#allocation3 + $0x290] sm:$0xff]
    %v353 = vld [vmem:[#allocation3 + $0x298] sm:$0xff]
    %v354 = vld [vmem:[#allocation3 + $0x2a0] sm:$0xff]
    %v355 = vld [vmem:[#allocation3 + $0x2a8] sm:$0xff]
    %v356 = vld [vmem:[#allocation3 + $0x2b0] sm:$0xff]
    %v357 = vld [vmem:[#allocation3 + $0x2b8] sm:$0xff]
    %v358 = vld [vmem:[#allocation3 + $0x2c0] sm:$0xff]
    %v359 = vld [vmem:[#allocation3 + $0x2c8] sm:$0xff]
    %v360 = vld [vmem:[#allocation3 + $0x2d0] sm:$0xff]
    %v361 = vld [vmem:[#allocation3 + $0x2d8] sm:$0xff]
    %v362 = vld [vmem:[#allocation3 + $0x2e0] sm:$0xff]
    %v363 = vld [vmem:[#allocation3 + $0x2e8] sm:$0xff]
    %v364 = vld [vmem:[#allocation3 + $0x2f0] sm:$0xff]
    %v365 = vld [vmem:[#allocation3 + $0x2f8] sm:$0xff]
    %v366 = vld [vmem:[#allocation3 + $0x300] sm:$0xff]
    %v367 = vld [vmem:[#allocation3 + $0x308] sm:$0xff]
    %v368 = vld [vmem:[#allocation3 + $0x310] sm:$0xff]
    %v369 = vld [vmem:[#allocation3 + $0x318] sm:$0xff]
    %v370 = vld [vmem:[#allocation3 + $0x320] sm:$0xff]
    %v371 = vld [vmem:[#allocation3 + $0x328] sm:$0xff]
    %v372 = vld [vmem:[#allocation3 + $0x330] sm:$0xff]
    %v373 = vld [vmem:[#allocation3 + $0x338] sm:$0xff]
    %v374 = vld [vmem:[#allocation3 + $0x340] sm:$0xff]
    %v375 = vld [vmem:[#allocation3 + $0x348] sm:$0xff]
    %v376 = vld [vmem:[#allocation3 + $0x350] sm:$0xff]
    %v377 = vld [vmem:[#allocation3 + $0x358] sm:$0xff]
    %v378 = vld [vmem:[#allocation3 + $0x360] sm:$0xff]
    %v379 = vld [vmem:[#allocation3 + $0x368] sm:$0xff]
    %v380 = vld [vmem:[#allocation3 + $0x370] sm:$0xff]
    %v381 = vld [vmem:[#allocation3 + $0x378] sm:$0xff]
    %v382 = vld [vmem:[#allocation3 + $0x380] sm:$0xff]
    %v383 = vld [vmem:[#allocation3 + $0x388] sm:$0xff]
    %v384 = vld [vmem:[#allocation3 + $0x390] sm:$0xff]
    %v385 = vld [vmem:[#allocation3 + $0x398] sm:$0xff]
    %v386 = vld [vmem:[#allocation3 + $0x3a0] sm:$0xff]
    %v387 = vld [vmem:[#allocation3 + $0x3a8] sm:$0xff]
    %v388 = vld [vmem:[#allocation3 + $0x3b0] sm:$0xff]
    %v389 = vld [vmem:[#allocation3 + $0x3b8] sm:$0xff]
    %v390 = vld [vmem:[#allocation3 + $0x3c0] sm:$0xff]
    %v391 = vld [vmem:[#allocation3 + $0x3c8] sm:$0xff]
    %v392 = vld [vmem:[#allocation3 + $0x3d0] sm:$0xff]
    %v393 = vld [vmem:[#allocation3 + $0x3d8] sm:$0xff]
    %v394 = vld [vmem:[#allocation3 + $0x3e0] sm:$0xff]
    %v395 = vld [vmem:[#allocation3 + $0x3e8] sm:$0xff]
    %v396 = vld [vmem:[#allocation3 + $0x3f0] sm:$0xff]
    %v397 = vld [vmem:[#allocation3 + $0x3f8] sm:$0xff]
    %v398 = vld [vmem:[#allocation3 + $0x400] sm:$0xff]
    %v399 = vld [vmem:[#allocation3 + $0x408] sm:$0xff]
    %v400 = vld [vmem:[#allocation3 + $0x410] sm:$0xff]
    %v401 = vld [vmem:[#allocation3 + $0x418] sm:$0xff]
    %v402 = vld [vmem:[#allocation3 + $0x420] sm:$0xff]
    %v403 = vld [vmem:[#allocation3 + $0x428] sm:$0xff]
    %v404 = vld [vmem:[#allocation3 + $0x430] sm:$0xff]
    %v405 = vld [vmem:[#allocation3 + $0x438] sm:$0xff]
    %v406 = vld [vmem:[#allocation3 + $0x440] sm:$0xff]
    %v407 = vld [vmem:[#allocation3 + $0x448] sm:$0xff]
    %v408 = vld [vmem:[#allocation3 + $0x450] sm:$0xff]
    %v409 = vld [vmem:[#allocation3 + $0x458] sm:$0xff]
    %v410 = vld [vmem:[#allocation3 + $0x460] sm:$0xff]
    %v411 = vld [vmem:[#allocation3 + $0x468] sm:$0xff]
    %v412 = vld [vmem:[#allocation3 + $0x470] sm:$0xff]
    %v413 = vld [vmem:[#allocation3 + $0x478] sm:$0xff]
    %v414 = vld [vmem:[#allocation3 + $0x480] sm:$0xff]
    %v415 = vld [vmem:[#allocation3 + $0x488] sm:$0xff]
    %v416 = vld [vmem:[#allocation3 + $0x490] sm:$0xff]
    %v417 = vld [vmem:[#allocation3 + $0x498] sm:$0xff]
    %v418 = vld [vmem:[#allocation3 + $0x4a0] sm:$0xff]
    %v419 = vld [vmem:[#allocation3 + $0x4a8] sm:$0xff]
    %v420 = vld [vmem:[#allocation3 + $0x4b0] sm:$0xff]
    %v421 = vld [vmem:[#allocation3 + $0x4b8] sm:$0xff]
    %v422 = vld [vmem:[#allocation3 + $0x4c0] sm:$0xff]
    %v423 = vld [vmem:[#allocation3 + $0x4c8] sm:$0xff]
    %v424 = vld [vmem:[#allocation3 + $0x4d0] sm:$0xff]
    %v425 = vld [vmem:[#allocation3 + $0x4d8] sm:$0xff]
    %v426 = vld [vmem:[#allocation3 + $0x4e0] sm:$0xff]
    %v427 = vld [vmem:[#allocation3 + $0x4e8] sm:$0xff]
    %v428 = vld [vmem:[#allocation3 + $0x4f0] sm:$0xff]
    %v429 = vld [vmem:[#allocation3 + $0x4f8] sm:$0xff]
    %v430 = vld [vmem:[#allocation3 + $0x500] sm:$0xff]
    %v431 = vld [vmem:[#allocation3 + $0x508] sm:$0xff]
    %v432 = vld [vmem:[#allocation3 + $0x510] sm:$0xff]
    %v433 = vld [vmem:[#allocation3 + $0x518] sm:$0xff]
    %v434 = vld [vmem:[#allocation3 + $0x520] sm:$0xff]
    %v435 = vld [vmem:[#allocation3 + $0x528] sm:$0xff]
    %v436 = vld [vmem:[#allocation3 + $0x530] sm:$0xff]
    %v437 = vld [vmem:[#allocation3 + $0x538] sm:$0xff]
    %v438 = vld [vmem:[#allocation3 + $0x540] sm:$0xff]
    %v439 = vld [vmem:[#allocation3 + $0x548] sm:$0xff]
    %v440 = vld [vmem:[#allocation3 + $0x550] sm:$0xff]
    %v441 = vld [vmem:[#allocation3 + $0x558] sm:$0xff]
    %v442 = vld [vmem:[#allocation3 + $0x560] sm:$0xff]
    %v443 = vld [vmem:[#allocation3 + $0x568] sm:$0xff]
    %v444 = vld [vmem:[#allocation3 + $0x570] sm:$0xff]
    %v445 = vld [vmem:[#allocation3 + $0x578] sm:$0xff]
    %v446 = vld [vmem:[#allocation3 + $0x580] sm:$0xff]
    %v447 = vld [vmem:[#allocation3 + $0x588] sm:$0xff]
    %v448 = vld [vmem:[#allocation3 + $0x590] sm:$0xff]
    %v449 = vld [vmem:[#allocation3 + $0x598] sm:$0xff]
    %v450 = vld [vmem:[#allocation3 + $0x5a0] sm:$0xff]
    %v451 = vld [vmem:[#allocation3 + $0x5a8] sm:$0xff]
    %v452 = vld [vmem:[#allocation3 + $0x5b0] sm:$0xff]
    %v453 = vld [vmem:[#allocation3 + $0x5b8] sm:$0xff]
    %v454 = vld [vmem:[#allocation3 + $0x5c0] sm:$0xff]
    %v455 = vld [vmem:[#allocation3 + $0x5c8] sm:$0xff]
    %v456 = vld [vmem:[#allocation3 + $0x5d0] sm:$0xff]
    %v457 = vld [vmem:[#allocation3 + $0x5d8] sm:$0xff]
    %v458 = vld [vmem:[#allocation3 + $0x5e0] sm:$0xff]
    %v459 = vld [vmem:[#allocation3 + $0x5e8] sm:$0xff]
    %v460 = vld [vmem:[#allocation3 + $0x5f0] sm:$0xff]
    %v461 = vld [vmem:[#allocation3 + $0x5f8] sm:$0xff]
    %v462 = vld [vmem:[#allocation3 + $0x600] sm:$0xff]
    %v463 = vld [vmem:[#allocation3 + $0x608] sm:$0xff]
    %v464 = vld [vmem:[#allocation3 + $0x610] sm:$0xff]
    %v465 = vld [vmem:[#allocation3 + $0x618] sm:$0xff]
    %v466 = vld [vmem:[#allocation3 + $0x620] sm:$0xff]
    %v467 = vld [vmem:[#allocation3 + $0x628] sm:$0xff]
    %v468 = vld [vmem:[#allocation3 + $0x630] sm:$0xff]
    %v469 = vld [vmem:[#allocation3 + $0x638] sm:$0xff]
    %v470 = vld [vmem:[#allocation3 + $0x640] sm:$0xff]
    %v471 = vld [vmem:[#allocation3 + $0x648] sm:$0xff]
    %v472 = vld [vmem:[#allocation3 + $0x650] sm:$0xff]
    %v473 = vld [vmem:[#allocation3 + $0x658] sm:$0xff]
    %v474 = vld [vmem:[#allocation3 + $0x660] sm:$0xff]
    %v475 = vld [vmem:[#allocation3 + $0x668] sm:$0xff]
    %v476 = vld [vmem:[#allocation3 + $0x670] sm:$0xff]
    %v477 = vld [vmem:[#allocation3 + $0x678] sm:$0xff]
    %v478 = vld [vmem:[#allocation3 + $0x680] sm:$0xff]
    %v479 = vld [vmem:[#allocation3 + $0x688] sm:$0xff]
    %v480 = vld [vmem:[#allocation3 + $0x690] sm:$0xff]
    %v481 = vld [vmem:[#allocation3 + $0x698] sm:$0xff]
    %v482 = vld [vmem:[#allocation3 + $0x6a0] sm:$0xff]
    %v483 = vld [vmem:[#allocation3 + $0x6a8] sm:$0xff]
    %v484 = vld [vmem:[#allocation3 + $0x6b0] sm:$0xff]
    %v485 = vld [vmem:[#allocation3 + $0x6b8] sm:$0xff]
    %v486 = vld [vmem:[#allocation3 + $0x6c0] sm:$0xff]
    %v487 = vld [vmem:[#allocation3 + $0x6c8] sm:$0xff]
    %v488 = vld [vmem:[#allocation3 + $0x6d0] sm:$0xff]
    %v489 = vld [vmem:[#allocation3 + $0x6d8] sm:$0xff]
    %v490 = vld [vmem:[#allocation3 + $0x6e0] sm:$0xff]
    %v491 = vld [vmem:[#allocation3 + $0x6e8] sm:$0xff]
    %v492 = vld [vmem:[#allocation3 + $0x6f0] sm:$0xff]
    %v493 = vld [vmem:[#allocation3 + $0x6f8] sm:$0xff]
    %v494 = vld [vmem:[#allocation3 + $0x700] sm:$0xff]
    %v495 = vld [vmem:[#allocation3 + $0x708] sm:$0xff]
    %v496 = vld [vmem:[#allocation3 + $0x710] sm:$0xff]
    %v497 = vld [vmem:[#allocation3 + $0x718] sm:$0xff]
    %v498 = vld [vmem:[#allocation3 + $0x720] sm:$0xff]
    %v499 = vld [vmem:[#allocation3 + $0x728] sm:$0xff]
    %v500 = vld [vmem:[#allocation3 + $0x730] sm:$0xff]
    %v501 = vld [vmem:[#allocation3 + $0x738] sm:$0xff]
    %v502 = vld [vmem:[#allocation3 + $0x740] sm:$0xff]
    %v503 = vld [vmem:[#allocation3 + $0x748] sm:$0xff]
    %v504 = vld [vmem:[#allocation3 + $0x750] sm:$0xff]
    %v505 = vld [vmem:[#allocation3 + $0x758] sm:$0xff]
    %v506 = vld [vmem:[#allocation3 + $0x760] sm:$0xff]
    %v507 = vld [vmem:[#allocation3 + $0x768] sm:$0xff]
    %v508 = vld [vmem:[#allocation3 + $0x770] sm:$0xff]
    %v509 = vld [vmem:[#allocation3 + $0x778] sm:$0xff]
    %v510 = vld [vmem:[#allocation3 + $0x780] sm:$0xff]
    %v511 = vld [vmem:[#allocation3 + $0x788] sm:$0xff]
    %v512 = vld [vmem:[#allocation3 + $0x790] sm:$0xff]
    %v513 = vld [vmem:[#allocation3 + $0x798] sm:$0xff]
    %v514 = vld [vmem:[#allocation3 + $0x7a0] sm:$0xff]
    %v515 = vld [vmem:[#allocation3 + $0x7a8] sm:$0xff]
    %v516 = vld [vmem:[#allocation3 + $0x7b0] sm:$0xff]
    %v517 = vld [vmem:[#allocation3 + $0x7b8] sm:$0xff]
    %v518 = vld [vmem:[#allocation3 + $0x7c0] sm:$0xff]
    %v519 = vld [vmem:[#allocation3 + $0x7c8] sm:$0xff]
    %v520 = vld [vmem:[#allocation3 + $0x7d0] sm:$0xff]
    %v521 = vld [vmem:[#allocation3 + $0x7d8] sm:$0xff]
    %v522 = vld [vmem:[#allocation3 + $0x7e0] sm:$0xff]
    %v523 = vld [vmem:[#allocation3 + $0x7e8] sm:$0xff]
    %v524 = vld [vmem:[#allocation3 + $0x7f0] sm:$0xff]
    %v525 = vld [vmem:[#allocation3 + $0x7f8] sm:$0xff]
    %v526 = vld [vmem:[%s5] sm:$0xff]
    %v528 = vperm.slane %v526, 0
    %v529 = vperm.slane %v526, 1
    %v530 = vperm.slane %v526, 2
    %v531 = vperm.slane %v526, 3
    %v532 = vperm.slane %v526, 4
    %v533 = vperm.slane %v526, 5
    %v534 = vperm.slane %v526, 6
    %v535 = vperm.slane %v526, 7
    %v800 = vunpack.c.l.b16 %v270
    %v801 = vunpack.c.h.b16 %v270
    %v802 = vunpack.c.l.b16 %v271
    %v803 = vunpack.c.h.b16 %v271
    %v804 = vunpack.c.l.b16 %v272
    %v805 = vunpack.c.h.b16 %v272
    %v806 = vunpack.c.l.b16 %v273
    %v807 = vunpack.c.h.b16 %v273
    %v808 = vunpack.c.l.b16 %v274
    %v809 = vunpack.c.h.b16 %v274
    %v810 = vunpack.c.l.b16 %v275
    %v811 = vunpack.c.h.b16 %v275
    %v812 = vunpack.c.l.b16 %v276
    %v813 = vunpack.c.h.b16 %v276
    %v814 = vunpack.c.l.b16 %v277
    %v815 = vunpack.c.h.b16 %v277
    %v816 = vunpack.c.l.b16 %v278
    %v817 = vunpack.c.h.b16 %v278
    %v818 = vunpack.c.l.b16 %v279
    %v819 = vunpack.c.h.b16 %v279
    %v820 = vunpack.c.l.b16 %v280
    %v821 = vunpack.c.h.b16 %v280
    %v822 = vunpack.c.l.b16 %v281
    %v823 = vunpack.c.h.b16 %v281
    %v824 = vunpack.c.l.b16 %v282
    %v825 = vunpack.c.h.b16 %v282
    %v826 = vunpack.c.l.b16 %v283
    %v827 = vunpack.c.h.b16 %v283
    %v828 = vunpack.c.l.b16 %v284
    %v829 = vunpack.c.h.b16 %v284
    %v830 = vunpack.c.l.b16 %v285
    %v831 = vunpack.c.h.b16 %v285
    %v832 = vunpack.c.l.b16 %v286
    %v833 = vunpack.c.h.b16 %v286
    %v834 = vunpack.c.l.b16 %v287
    %v835 = vunpack.c.h.b16 %v287
    %v836 = vunpack.c.l.b16 %v288
    %v837 = vunpack.c.h.b16 %v288
    %v838 = vunpack.c.l.b16 %v289
    %v839 = vunpack.c.h.b16 %v289
    %v840 = vunpack.c.l.b16 %v290
    %v841 = vunpack.c.h.b16 %v290
    %v842 = vunpack.c.l.b16 %v291
    %v843 = vunpack.c.h.b16 %v291
    %v844 = vunpack.c.l.b16 %v292
    %v845 = vunpack.c.h.b16 %v292
    %v846 = vunpack.c.l.b16 %v293
    %v847 = vunpack.c.h.b16 %v293
    %v848 = vunpack.c.l.b16 %v294
    %v849 = vunpack.c.h.b16 %v294
    %v850 = vunpack.c.l.b16 %v295
    %v851 = vunpack.c.h.b16 %v295
    %v852 = vunpack.c.l.b16 %v296
    %v853 = vunpack.c.h.b16 %v296
    %v854 = vunpack.c.l.b16 %v297
    %v855 = vunpack.c.h.b16 %v297
    %v856 = vunpack.c.l.b16 %v298
    %v857 = vunpack.c.h.b16 %v298
    %v858 = vunpack.c.l.b16 %v299
    %v859 = vunpack.c.h.b16 %v299
    %v860 = vunpack.c.l.b16 %v300
    %v861 = vunpack.c.h.b16 %v300
    %v862 = vunpack.c.l.b16 %v301
    %v863 = vunpack.c.h.b16 %v301
    %v864 = vunpack.c.l.b16 %v302
    %v865 = vunpack.c.h.b16 %v302
    %v866 = vunpack.c.l.b16 %v303
    %v867 = vunpack.c.h.b16 %v303
    %v868 = vunpack.c.l.b16 %v304
    %v869 = vunpack.c.h.b16 %v304
    %v870 = vunpack.c.l.b16 %v305
    %v871 = vunpack.c.h.b16 %v305
    %v872 = vunpack.c.l.b16 %v306
    %v873 = vunpack.c.h.b16 %v306
    %v874 = vunpack.c.l.b16 %v307
    %v875 = vunpack.c.h.b16 %v307
    %v876 = vunpack.c.l.b16 %v308
    %v877 = vunpack.c.h.b16 %v308
    %v878 = vunpack.c.l.b16 %v309
    %v879 = vunpack.c.h.b16 %v309
    %v880 = vunpack.c.l.b16 %v310
    %v881 = vunpack.c.h.b16 %v310
    %v882 = vunpack.c.l.b16 %v311
    %v883 = vunpack.c.h.b16 %v311
    %v884 = vunpack.c.l.b16 %v312
    %v885 = vunpack.c.h.b16 %v312
    %v886 = vunpack.c.l.b16 %v313
    %v887 = vunpack.c.h.b16 %v313
    %v888 = vunpack.c.l.b16 %v314
    %v889 = vunpack.c.h.b16 %v314
    %v890 = vunpack.c.l.b16 %v315
    %v891 = vunpack.c.h.b16 %v315
    %v892 = vunpack.c.l.b16 %v316
    %v893 = vunpack.c.h.b16 %v316
    %v894 = vunpack.c.l.b16 %v317
    %v895 = vunpack.c.h.b16 %v317
    %v896 = vunpack.c.l.b16 %v318
    %v897 = vunpack.c.h.b16 %v318
    %v898 = vunpack.c.l.b16 %v319
    %v899 = vunpack.c.h.b16 %v319
    %v900 = vunpack.c.l.b16 %v320
    %v901 = vunpack.c.h.b16 %v320
    %v902 = vunpack.c.l.b16 %v321
    %v903 = vunpack.c.h.b16 %v321
    %v904 = vunpack.c.l.b16 %v322
    %v905 = vunpack.c.h.b16 %v322
    %v906 = vunpack.c.l.b16 %v323
    %v907 = vunpack.c.h.b16 %v323
    %v908 = vunpack.c.l.b16 %v324
    %v909 = vunpack.c.h.b16 %v324
    %v910 = vunpack.c.l.b16 %v325
    %v911 = vunpack.c.h.b16 %v325
    %v912 = vunpack.c.l.b16 %v326
    %v913 = vunpack.c.h.b16 %v326
    %v914 = vunpack.c.l.b16 %v327
    %v915 = vunpack.c.h.b16 %v327
    %v916 = vunpack.c.l.b16 %v328
    %v917 = vunpack.c.h.b16 %v328
    %v918 = vunpack.c.l.b16 %v329
    %v919 = vunpack.c.h.b16 %v329
    %v920 = vunpack.c.l.b16 %v330
    %v921 = vunpack.c.h.b16 %v330
    %v922 = vunpack.c.l.b16 %v331
    %v923 = vunpack.c.h.b16 %v331
    %v924 = vunpack.c.l.b16 %v332
    %v925 = vunpack.c.h.b16 %v332
    %v926 = vunpack.c.l.b16 %v333
    %v927 = vunpack.c.h.b16 %v333
    %v928 = vunpack.c.l.b16 %v334
    %v929 = vunpack.c.h.b16 %v334
    %v930 = vunpack.c.l.b16 %v335
    %v931 = vunpack.c.h.b16 %v335
    %v932 = vunpack.c.l.b16 %v336
    %v933 = vunpack.c.h.b16 %v336
    %v934 = vunpack.c.l.b16 %v337
    %v935 = vunpack.c.h.b16 %v337
    %v936 = vunpack.c.l.b16 %v338
    %v937 = vunpack.c.h.b16 %v338
    %v938 = vunpack.c.l.b16 %v339
    %v939 = vunpack.c.h.b16 %v339
    %v940 = vunpack.c.l.b16 %v340
    %v941 = vunpack.c.h.b16 %v340
    %v942 = vunpack.c.l.b16 %v341
    %v943 = vunpack.c.h.b16 %v341
    %v944 = vunpack.c.l.b16 %v342
    %v945 = vunpack.c.h.b16 %v342
    %v946 = vunpack.c.l.b16 %v343
    %v947 = vunpack.c.h.b16 %v343
    %v948 = vunpack.c.l.b16 %v344
    %v949 = vunpack.c.h.b16 %v344
    %v950 = vunpack.c.l.b16 %v345
    %v951 = vunpack.c.h.b16 %v345
    %v952 = vunpack.c.l.b16 %v346
    %v953 = vunpack.c.h.b16 %v346
    %v954 = vunpack.c.l.b16 %v347
    %v955 = vunpack.c.h.b16 %v347
    %v956 = vunpack.c.l.b16 %v348
    %v957 = vunpack.c.h.b16 %v348
    %v958 = vunpack.c.l.b16 %v349
    %v959 = vunpack.c.h.b16 %v349
    %v960 = vunpack.c.l.b16 %v350
    %v961 = vunpack.c.h.b16 %v350
    %v962 = vunpack.c.l.b16 %v351
    %v963 = vunpack.c.h.b16 %v351
    %v964 = vunpack.c.l.b16 %v352
    %v965 = vunpack.c.h.b16 %v352
    %v966 = vunpack.c.l.b16 %v353
    %v967 = vunpack.c.h.b16 %v353
    %v968 = vunpack.c.l.b16 %v354
    %v969 = vunpack.c.h.b16 %v354
    %v970 = vunpack.c.l.b16 %v355
    %v971 = vunpack.c.h.b16 %v355
    %v972 = vunpack.c.l.b16 %v356
    %v973 = vunpack.c.h.b16 %v356
    %v974 = vunpack.c.l.b16 %v357
    %v975 = vunpack.c.h.b16 %v357
    %v976 = vunpack.c.l.b16 %v358
    %v977 = vunpack.c.h.b16 %v358
    %v978 = vunpack.c.l.b16 %v359
    %v979 = vunpack.c.h.b16 %v359
    %v980 = vunpack.c.l.b16 %v360
    %v981 = vunpack.c.h.b16 %v360
    %v982 = vunpack.c.l.b16 %v361
    %v983 = vunpack.c.h.b16 %v361
    %v984 = vunpack.c.l.b16 %v362
    %v985 = vunpack.c.h.b16 %v362
    %v986 = vunpack.c.l.b16 %v363
    %v987 = vunpack.c.h.b16 %v363
    %v988 = vunpack.c.l.b16 %v364
    %v989 = vunpack.c.h.b16 %v364
    %v990 = vunpack.c.l.b16 %v365
    %v991 = vunpack.c.h.b16 %v365
    %v992 = vunpack.c.l.b16 %v366
    %v993 = vunpack.c.h.b16 %v366
    %v994 = vunpack.c.l.b16 %v367
    %v995 = vunpack.c.h.b16 %v367
    %v996 = vunpack.c.l.b16 %v368
    %v997 = vunpack.c.h.b16 %v368
    %v998 = vunpack.c.l.b16 %v369
    %v999 = vunpack.c.h.b16 %v369
    %v1000 = vunpack.c.l.b16 %v370
    %v1001 = vunpack.c.h.b16 %v370
    %v1002 = vunpack.c.l.b16 %v371
    %v1003 = vunpack.c.h.b16 %v371
    %v1004 = vunpack.c.l.b16 %v372
    %v1005 = vunpack.c.h.b16 %v372
    %v1006 = vunpack.c.l.b16 %v373
    %v1007 = vunpack.c.h.b16 %v373
    %v1008 = vunpack.c.l.b16 %v374
    %v1009 = vunpack.c.h.b16 %v374
    %v1010 = vunpack.c.l.b16 %v375
    %v1011 = vunpack.c.h.b16 %v375
    %v1012 = vunpack.c.l.b16 %v376
    %v1013 = vunpack.c.h.b16 %v376
    %v1014 = vunpack.c.l.b16 %v377
    %v1015 = vunpack.c.h.b16 %v377
    %v1016 = vunpack.c.l.b16 %v378
    %v1017 = vunpack.c.h.b16 %v378
    %v1018 = vunpack.c.l.b16 %v379
    %v1019 = vunpack.c.h.b16 %v379
    %v1020 = vunpack.c.l.b16 %v380
    %v1021 = vunpack.c.h.b16 %v380
    %v1022 = vunpack.c.l.b16 %v381
    %v1023 = vunpack.c.h.b16 %v381
    %v1024 = vunpack.c.l.b16 %v382
    %v1025 = vunpack.c.h.b16 %v382
    %v1026 = vunpack.c.l.b16 %v383
    %v1027 = vunpack.c.h.b16 %v383
    %v1028 = vunpack.c.l.b16 %v384
    %v1029 = vunpack.c.h.b16 %v384
    %v1030 = vunpack.c.l.b16 %v385
    %v1031 = vunpack.c.h.b16 %v385
    %v1032 = vunpack.c.l.b16 %v386
    %v1033 = vunpack.c.h.b16 %v386
    %v1034 = vunpack.c.l.b16 %v387
    %v1035 = vunpack.c.h.b16 %v387
    %v1036 = vunpack.c.l.b16 %v388
    %v1037 = vunpack.c.h.b16 %v388
    %v1038 = vunpack.c.l.b16 %v389
    %v1039 = vunpack.c.h.b16 %v389
    %v1040 = vunpack.c.l.b16 %v390
    %v1041 = vunpack.c.h.b16 %v390
    %v1042 = vunpack.c.l.b16 %v391
    %v1043 = vunpack.c.h.b16 %v391
    %v1044 = vunpack.c.l.b16 %v392
    %v1045 = vunpack.c.h.b16 %v392
    %v1046 = vunpack.c.l.b16 %v393
    %v1047 = vunpack.c.h.b16 %v393
    %v1048 = vunpack.c.l.b16 %v394
    %v1049 = vunpack.c.h.b16 %v394
    %v1050 = vunpack.c.l.b16 %v395
    %v1051 = vunpack.c.h.b16 %v395
    %v1052 = vunpack.c.l.b16 %v396
    %v1053 = vunpack.c.h.b16 %v396
    %v1054 = vunpack.c.l.b16 %v397
    %v1055 = vunpack.c.h.b16 %v397
    %v1056 = vunpack.c.l.b16 %v398
    %v1057 = vunpack.c.h.b16 %v398
    %v1058 = vunpack.c.l.b16 %v399
    %v1059 = vunpack.c.h.b16 %v399
    %v1060 = vunpack.c.l.b16 %v400
    %v1061 = vunpack.c.h.b16 %v400
    %v1062 = vunpack.c.l.b16 %v401
    %v1063 = vunpack.c.h.b16 %v401
    %v1064 = vunpack.c.l.b16 %v402
    %v1065 = vunpack.c.h.b16 %v402
    %v1066 = vunpack.c.l.b16 %v403
    %v1067 = vunpack.c.h.b16 %v403
    %v1068 = vunpack.c.l.b16 %v404
    %v1069 = vunpack.c.h.b16 %v404
    %v1070 = vunpack.c.l.b16 %v405
    %v1071 = vunpack.c.h.b16 %v405
    %v1072 = vunpack.c.l.b16 %v406
    %v1073 = vunpack.c.h.b16 %v406
    %v1074 = vunpack.c.l.b16 %v407
    %v1075 = vunpack.c.h.b16 %v407
    %v1076 = vunpack.c.l.b16 %v408
    %v1077 = vunpack.c.h.b16 %v408
    %v1078 = vunpack.c.l.b16 %v409
    %v1079 = vunpack.c.h.b16 %v409
    %v1080 = vunpack.c.l.b16 %v410
    %v1081 = vunpack.c.h.b16 %v410
    %v1082 = vunpack.c.l.b16 %v411
    %v1083 = vunpack.c.h.b16 %v411
    %v1084 = vunpack.c.l.b16 %v412
    %v1085 = vunpack.c.h.b16 %v412
    %v1086 = vunpack.c.l.b16 %v413
    %v1087 = vunpack.c.h.b16 %v413
    %v1088 = vunpack.c.l.b16 %v414
    %v1089 = vunpack.c.h.b16 %v414
    %v1090 = vunpack.c.l.b16 %v415
    %v1091 = vunpack.c.h.b16 %v415
    %v1092 = vunpack.c.l.b16 %v416
    %v1093 = vunpack.c.h.b16 %v416
    %v1094 = vunpack.c.l.b16 %v417
    %v1095 = vunpack.c.h.b16 %v417
    %v1096 = vunpack.c.l.b16 %v418
    %v1097 = vunpack.c.h.b16 %v418
    %v1098 = vunpack.c.l.b16 %v419
    %v1099 = vunpack.c.h.b16 %v419
    %v1100 = vunpack.c.l.b16 %v420
    %v1101 = vunpack.c.h.b16 %v420
    %v1102 = vunpack.c.l.b16 %v421
    %v1103 = vunpack.c.h.b16 %v421
    %v1104 = vunpack.c.l.b16 %v422
    %v1105 = vunpack.c.h.b16 %v422
    %v1106 = vunpack.c.l.b16 %v423
    %v1107 = vunpack.c.h.b16 %v423
    %v1108 = vunpack.c.l.b16 %v424
    %v1109 = vunpack.c.h.b16 %v424
    %v1110 = vunpack.c.l.b16 %v425
    %v1111 = vunpack.c.h.b16 %v425
    %v1112 = vunpack.c.l.b16 %v426
    %v1113 = vunpack.c.h.b16 %v426
    %v1114 = vunpack.c.l.b16 %v427
    %v1115 = vunpack.c.h.b16 %v427
    %v1116 = vunpack.c.l.b16 %v428
    %v1117 = vunpack.c.h.b16 %v428
    %v1118 = vunpack.c.l.b16 %v429
    %v1119 = vunpack.c.h.b16 %v429
    %v1120 = vunpack.c.l.b16 %v430
    %v1121 = vunpack.c.h.b16 %v430
    %v1122 = vunpack.c.l.b16 %v431
    %v1123 = vunpack.c.h.b16 %v431
    %v1124 = vunpack.c.l.b16 %v432
    %v1125 = vunpack.c.h.b16 %v432
    %v1126 = vunpack.c.l.b16 %v433
    %v1127 = vunpack.c.h.b16 %v433
    %v1128 = vunpack.c.l.b16 %v434
    %v1129 = vunpack.c.h.b16 %v434
    %v1130 = vunpack.c.l.b16 %v435
    %v1131 = vunpack.c.h.b16 %v435
    %v1132 = vunpack.c.l.b16 %v436
    %v1133 = vunpack.c.h.b16 %v436
    %v1134 = vunpack.c.l.b16 %v437
    %v1135 = vunpack.c.h.b16 %v437
    %v1136 = vunpack.c.l.b16 %v438
    %v1137 = vunpack.c.h.b16 %v438
    %v1138 = vunpack.c.l.b16 %v439
    %v1139 = vunpack.c.h.b16 %v439
    %v1140 = vunpack.c.l.b16 %v440
    %v1141 = vunpack.c.h.b16 %v440
    %v1142 = vunpack.c.l.b16 %v441
    %v1143 = vunpack.c.h.b16 %v441
    %v1144 = vunpack.c.l.b16 %v442
    %v1145 = vunpack.c.h.b16 %v442
    %v1146 = vunpack.c.l.b16 %v443
    %v1147 = vunpack.c.h.b16 %v443
    %v1148 = vunpack.c.l.b16 %v444
    %v1149 = vunpack.c.h.b16 %v444
    %v1150 = vunpack.c.l.b16 %v445
    %v1151 = vunpack.c.h.b16 %v445
    %v1152 = vunpack.c.l.b16 %v446
    %v1153 = vunpack.c.h.b16 %v446
    %v1154 = vunpack.c.l.b16 %v447
    %v1155 = vunpack.c.h.b16 %v447
    %v1156 = vunpack.c.l.b16 %v448
    %v1157 = vunpack.c.h.b16 %v448
    %v1158 = vunpack.c.l.b16 %v449
    %v1159 = vunpack.c.h.b16 %v449
    %v1160 = vunpack.c.l.b16 %v450
    %v1161 = vunpack.c.h.b16 %v450
    %v1162 = vunpack.c.l.b16 %v451
    %v1163 = vunpack.c.h.b16 %v451
    %v1164 = vunpack.c.l.b16 %v452
    %v1165 = vunpack.c.h.b16 %v452
    %v1166 = vunpack.c.l.b16 %v453
    %v1167 = vunpack.c.h.b16 %v453
    %v1168 = vunpack.c.l.b16 %v454
    %v1169 = vunpack.c.h.b16 %v454
    %v1170 = vunpack.c.l.b16 %v455
    %v1171 = vunpack.c.h.b16 %v455
    %v1172 = vunpack.c.l.b16 %v456
    %v1173 = vunpack.c.h.b16 %v456
    %v1174 = vunpack.c.l.b16 %v457
    %v1175 = vunpack.c.h.b16 %v457
    %v1176 = vunpack.c.l.b16 %v458
    %v1177 = vunpack.c.h.b16 %v458
    %v1178 = vunpack.c.l.b16 %v459
    %v1179 = vunpack.c.h.b16 %v459
    %v1180 = vunpack.c.l.b16 %v460
    %v1181 = vunpack.c.h.b16 %v460
    %v1182 = vunpack.c.l.b16 %v461
    %v1183 = vunpack.c.h.b16 %v461
    %v1184 = vunpack.c.l.b16 %v462
    %v1185 = vunpack.c.h.b16 %v462
    %v1186 = vunpack.c.l.b16 %v463
    %v1187 = vunpack.c.h.b16 %v463
    %v1188 = vunpack.c.l.b16 %v464
    %v1189 = vunpack.c.h.b16 %v464
    %v1190 = vunpack.c.l.b16 %v465
    %v1191 = vunpack.c.h.b16 %v465
    %v1192 = vunpack.c.l.b16 %v466
    %v1193 = vunpack.c.h.b16 %v466
    %v1194 = vunpack.c.l.b16 %v467
    %v1195 = vunpack.c.h.b16 %v467
    %v1196 = vunpack.c.l.b16 %v468
    %v1197 = vunpack.c.h.b16 %v468
    %v1198 = vunpack.c.l.b16 %v469
    %v1199 = vunpack.c.h.b16 %v469
    %v1200 = vunpack.c.l.b16 %v470
    %v1201 = vunpack.c.h.b16 %v470
    %v1202 = vunpack.c.l.b16 %v471
    %v1203 = vunpack.c.h.b16 %v471
    %v1204 = vunpack.c.l.b16 %v472
    %v1205 = vunpack.c.h.b16 %v472
    %v1206 = vunpack.c.l.b16 %v473
    %v1207 = vunpack.c.h.b16 %v473
    %v1208 = vunpack.c.l.b16 %v474
    %v1209 = vunpack.c.h.b16 %v474
    %v1210 = vunpack.c.l.b16 %v475
    %v1211 = vunpack.c.h.b16 %v475
    %v1212 = vunpack.c.l.b16 %v476
    %v1213 = vunpack.c.h.b16 %v476
    %v1214 = vunpack.c.l.b16 %v477
    %v1215 = vunpack.c.h.b16 %v477
    %v1216 = vunpack.c.l.b16 %v478
    %v1217 = vunpack.c.h.b16 %v478
    %v1218 = vunpack.c.l.b16 %v479
    %v1219 = vunpack.c.h.b16 %v479
    %v1220 = vunpack.c.l.b16 %v480
    %v1221 = vunpack.c.h.b16 %v480
    %v1222 = vunpack.c.l.b16 %v481
    %v1223 = vunpack.c.h.b16 %v481
    %v1224 = vunpack.c.l.b16 %v482
    %v1225 = vunpack.c.h.b16 %v482
    %v1226 = vunpack.c.l.b16 %v483
    %v1227 = vunpack.c.h.b16 %v483
    %v1228 = vunpack.c.l.b16 %v484
    %v1229 = vunpack.c.h.b16 %v484
    %v1230 = vunpack.c.l.b16 %v485
    %v1231 = vunpack.c.h.b16 %v485
    %v1232 = vunpack.c.l.b16 %v486
    %v1233 = vunpack.c.h.b16 %v486
    %v1234 = vunpack.c.l.b16 %v487
    %v1235 = vunpack.c.h.b16 %v487
    %v1236 = vunpack.c.l.b16 %v488
    %v1237 = vunpack.c.h.b16 %v488
    %v1238 = vunpack.c.l.b16 %v489
    %v1239 = vunpack.c.h.b16 %v489
    %v1240 = vunpack.c.l.b16 %v490
    %v1241 = vunpack.c.h.b16 %v490
    %v1242 = vunpack.c.l.b16 %v491
    %v1243 = vunpack.c.h.b16 %v491
    %v1244 = vunpack.c.l.b16 %v492
    %v1245 = vunpack.c.h.b16 %v492
    %v1246 = vunpack.c.l.b16 %v493
    %v1247 = vunpack.c.h.b16 %v493
    %v1248 = vunpack.c.l.b16 %v494
    %v1249 = vunpack.c.h.b16 %v494
    %v1250 = vunpack.c.l.b16 %v495
    %v1251 = vunpack.c.h.b16 %v495
    %v1252 = vunpack.c.l.b16 %v496
    %v1253 = vunpack.c.h.b16 %v496
    %v1254 = vunpack.c.l.b16 %v497
    %v1255 = vunpack.c.h.b16 %v497
    %v1256 = vunpack.c.l.b16 %v498
    %v1257 = vunpack.c.h.b16 %v498
    %v1258 = vunpack.c.l.b16 %v499
    %v1259 = vunpack.c.h.b16 %v499
    %v1260 = vunpack.c.l.b16 %v500
    %v1261 = vunpack.c.h.b16 %v500
    %v1262 = vunpack.c.l.b16 %v501
    %v1263 = vunpack.c.h.b16 %v501
    %v1264 = vunpack.c.l.b16 %v502
    %v1265 = vunpack.c.h.b16 %v502
    %v1266 = vunpack.c.l.b16 %v503
    %v1267 = vunpack.c.h.b16 %v503
    %v1268 = vunpack.c.l.b16 %v504
    %v1269 = vunpack.c.h.b16 %v504
    %v1270 = vunpack.c.l.b16 %v505
    %v1271 = vunpack.c.h.b16 %v505
    %v1272 = vunpack.c.l.b16 %v506
    %v1273 = vunpack.c.h.b16 %v506
    %v1274 = vunpack.c.l.b16 %v507
    %v1275 = vunpack.c.h.b16 %v507
    %v1276 = vunpack.c.l.b16 %v508
    %v1277 = vunpack.c.h.b16 %v508
    %v1278 = vunpack.c.l.b16 %v509
    %v1279 = vunpack.c.h.b16 %v509
    %v1280 = vunpack.c.l.b16 %v510
    %v1281 = vunpack.c.h.b16 %v510
    %v1282 = vunpack.c.l.b16 %v511
    %v1283 = vunpack.c.h.b16 %v511
    %v1284 = vunpack.c.l.b16 %v512
    %v1285 = vunpack.c.h.b16 %v512
    %v1286 = vunpack.c.l.b16 %v513
    %v1287 = vunpack.c.h.b16 %v513
    %v1288 = vunpack.c.l.b16 %v514
    %v1289 = vunpack.c.h.b16 %v514
    %v1290 = vunpack.c.l.b16 %v515
    %v1291 = vunpack.c.h.b16 %v515
    %v1292 = vunpack.c.l.b16 %v516
    %v1293 = vunpack.c.h.b16 %v516
    %v1294 = vunpack.c.l.b16 %v517
    %v1295 = vunpack.c.h.b16 %v517
    %v1296 = vunpack.c.l.b16 %v518
    %v1297 = vunpack.c.h.b16 %v518
    %v1298 = vunpack.c.l.b16 %v519
    %v1299 = vunpack.c.h.b16 %v519
    %v1300 = vunpack.c.l.b16 %v520
    %v1301 = vunpack.c.h.b16 %v520
    %v1302 = vunpack.c.l.b16 %v521
    %v1303 = vunpack.c.h.b16 %v521
    %v1304 = vunpack.c.l.b16 %v522
    %v1305 = vunpack.c.h.b16 %v522
    %v1306 = vunpack.c.l.b16 %v523
    %v1307 = vunpack.c.h.b16 %v523
    %v1308 = vunpack.c.l.b16 %v524
    %v1309 = vunpack.c.h.b16 %v524
    %v1310 = vunpack.c.l.b16 %v525
    %v1311 = vunpack.c.h.b16 %v525
    %v1312 = vpack.c.b16 %v808, %v800
    %v1313 = vpack.c.b16 %v809, %v801
    %v1314 = vpack.c.b16 %v810, %v802
    %v1315 = vpack.c.b16 %v811, %v803
    %v1316 = vpack.c.b16 %v812, %v804
    %v1317 = vpack.c.b16 %v813, %v805
    %v1318 = vpack.c.b16 %v814, %v806
    %v1319 = vpack.c.b16 %v815, %v807
    %v1320 = vpack.c.b16 %v824, %v816
    %v1321 = vpack.c.b16 %v825, %v817
    %v1322 = vpack.c.b16 %v826, %v818
    %v1323 = vpack.c.b16 %v827, %v819
    %v1324 = vpack.c.b16 %v828, %v820
    %v1325 = vpack.c.b16 %v829, %v821
    %v1326 = vpack.c.b16 %v830, %v822
    %v1327 = vpack.c.b16 %v831, %v823
    %v1328 = vpack.c.b16 %v840, %v832
    %v1329 = vpack.c.b16 %v841, %v833
    %v1330 = vpack.c.b16 %v842, %v834
    %v1331 = vpack.c.b16 %v843, %v835
    %v1332 = vpack.c.b16 %v844, %v836
    %v1333 = vpack.c.b16 %v845, %v837
    %v1334 = vpack.c.b16 %v846, %v838
    %v1335 = vpack.c.b16 %v847, %v839
    %v1336 = vpack.c.b16 %v856, %v848
    %v1337 = vpack.c.b16 %v857, %v849
    %v1338 = vpack.c.b16 %v858, %v850
    %v1339 = vpack.c.b16 %v859, %v851
    %v1340 = vpack.c.b16 %v860, %v852
    %v1341 = vpack.c.b16 %v861, %v853
    %v1342 = vpack.c.b16 %v862, %v854
    %v1343 = vpack.c.b16 %v863, %v855
    %v1344 = vpack.c.b16 %v872, %v864
    %v1345 = vpack.c.b16 %v873, %v865
    %v1346 = vpack.c.b16 %v874, %v866
    %v1347 = vpack.c.b16 %v875, %v867
    %v1348 = vpack.c.b16 %v876, %v868
    %v1349 = vpack.c.b16 %v877, %v869
    %v1350 = vpack.c.b16 %v878, %v870
    %v1351 = vpack.c.b16 %v879, %v871
    %v1352 = vpack.c.b16 %v888, %v880
    %v1353 = vpack.c.b16 %v889, %v881
    %v1354 = vpack.c.b16 %v890, %v882
    %v1355 = vpack.c.b16 %v891, %v883
    %v1356 = vpack.c.b16 %v892, %v884
    %v1357 = vpack.c.b16 %v893, %v885
    %v1358 = vpack.c.b16 %v894, %v886
    %v1359 = vpack.c.b16 %v895, %v887
    %v1360 = vpack.c.b16 %v904, %v896
    %v1361 = vpack.c.b16 %v905, %v897
    %v1362 = vpack.c.b16 %v906, %v898
    %v1363 = vpack.c.b16 %v907, %v899
    %v1364 = vpack.c.b16 %v908, %v900
    %v1365 = vpack.c.b16 %v909, %v901
    %v1366 = vpack.c.b16 %v910, %v902
    %v1367 = vpack.c.b16 %v911, %v903
    %v1368 = vpack.c.b16 %v920, %v912
    %v1369 = vpack.c.b16 %v921, %v913
    %v1370 = vpack.c.b16 %v922, %v914
    %v1371 = vpack.c.b16 %v923, %v915
    %v1372 = vpack.c.b16 %v924, %v916
    %v1373 = vpack.c.b16 %v925, %v917
    %v1374 = vpack.c.b16 %v926, %v918
    %v1375 = vpack.c.b16 %v927, %v919
    %v1376 = vpack.c.b16 %v936, %v928
    %v1377 = vpack.c.b16 %v937, %v929
    %v1378 = vpack.c.b16 %v938, %v930
    %v1379 = vpack.c.b16 %v939, %v931
    %v1380 = vpack.c.b16 %v940, %v932
    %v1381 = vpack.c.b16 %v941, %v933
    %v1382 = vpack.c.b16 %v942, %v934
    %v1383 = vpack.c.b16 %v943, %v935
    %v1384 = vpack.c.b16 %v952, %v944
    %v1385 = vpack.c.b16 %v953, %v945
    %v1386 = vpack.c.b16 %v954, %v946
    %v1387 = vpack.c.b16 %v955, %v947
    %v1388 = vpack.c.b16 %v956, %v948
    %v1389 = vpack.c.b16 %v957, %v949
    %v1390 = vpack.c.b16 %v958, %v950
    %v1391 = vpack.c.b16 %v959, %v951
    %v1392 = vpack.c.b16 %v968, %v960
    %v1393 = vpack.c.b16 %v969, %v961
    %v1394 = vpack.c.b16 %v970, %v962
    %v1395 = vpack.c.b16 %v971, %v963
    %v1396 = vpack.c.b16 %v972, %v964
    %v1397 = vpack.c.b16 %v973, %v965
    %v1398 = vpack.c.b16 %v974, %v966
    %v1399 = vpack.c.b16 %v975, %v967
    %v1400 = vpack.c.b16 %v984, %v976
    %v1401 = vpack.c.b16 %v985, %v977
    %v1402 = vpack.c.b16 %v986, %v978
    %v1403 = vpack.c.b16 %v987, %v979
    %v1404 = vpack.c.b16 %v988, %v980
    %v1405 = vpack.c.b16 %v989, %v981
    %v1406 = vpack.c.b16 %v990, %v982
    %v1407 = vpack.c.b16 %v991, %v983
    %v1408 = vpack.c.b16 %v1000, %v992
    %v1409 = vpack.c.b16 %v1001, %v993
    %v1410 = vpack.c.b16 %v1002, %v994
    %v1411 = vpack.c.b16 %v1003, %v995
    %v1412 = vpack.c.b16 %v1004, %v996
    %v1413 = vpack.c.b16 %v1005, %v997
    %v1414 = vpack.c.b16 %v1006, %v998
    %v1415 = vpack.c.b16 %v1007, %v999
    %v1416 = vpack.c.b16 %v1016, %v1008
    %v1417 = vpack.c.b16 %v1017, %v1009
    %v1418 = vpack.c.b16 %v1018, %v1010
    %v1419 = vpack.c.b16 %v1019, %v1011
    %v1420 = vpack.c.b16 %v1020, %v1012
    %v1421 = vpack.c.b16 %v1021, %v1013
    %v1422 = vpack.c.b16 %v1022, %v1014
    %v1423 = vpack.c.b16 %v1023, %v1015
    %v1424 = vpack.c.b16 %v1032, %v1024
    %v1425 = vpack.c.b16 %v1033, %v1025
    %v1426 = vpack.c.b16 %v1034, %v1026
    %v1427 = vpack.c.b16 %v1035, %v1027
    %v1428 = vpack.c.b16 %v1036, %v1028
    %v1429 = vpack.c.b16 %v1037, %v1029
    %v1430 = vpack.c.b16 %v1038, %v1030
    %v1431 = vpack.c.b16 %v1039, %v1031
    %v1432 = vpack.c.b16 %v1048, %v1040
    %v1433 = vpack.c.b16 %v1049, %v1041
    %v1434 = vpack.c.b16 %v1050, %v1042
    %v1435 = vpack.c.b16 %v1051, %v1043
    %v1436 = vpack.c.b16 %v1052, %v1044
    %v1437 = vpack.c.b16 %v1053, %v1045
    %v1438 = vpack.c.b16 %v1054, %v1046
    %v1439 = vpack.c.b16 %v1055, %v1047
    %v1440 = vpack.c.b16 %v1064, %v1056
    %v1441 = vpack.c.b16 %v1065, %v1057
    %v1442 = vpack.c.b16 %v1066, %v1058
    %v1443 = vpack.c.b16 %v1067, %v1059
    %v1444 = vpack.c.b16 %v1068, %v1060
    %v1445 = vpack.c.b16 %v1069, %v1061
    %v1446 = vpack.c.b16 %v1070, %v1062
    %v1447 = vpack.c.b16 %v1071, %v1063
    %v1448 = vpack.c.b16 %v1080, %v1072
    %v1449 = vpack.c.b16 %v1081, %v1073
    %v1450 = vpack.c.b16 %v1082, %v1074
    %v1451 = vpack.c.b16 %v1083, %v1075
    %v1452 = vpack.c.b16 %v1084, %v1076
    %v1453 = vpack.c.b16 %v1085, %v1077
    %v1454 = vpack.c.b16 %v1086, %v1078
    %v1455 = vpack.c.b16 %v1087, %v1079
    %v1456 = vpack.c.b16 %v1096, %v1088
    %v1457 = vpack.c.b16 %v1097, %v1089
    %v1458 = vpack.c.b16 %v1098, %v1090
    %v1459 = vpack.c.b16 %v1099, %v1091
    %v1460 = vpack.c.b16 %v1100, %v1092
    %v1461 = vpack.c.b16 %v1101, %v1093
    %v1462 = vpack.c.b16 %v1102, %v1094
    %v1463 = vpack.c.b16 %v1103, %v1095
    %v1464 = vpack.c.b16 %v1112, %v1104
    %v1465 = vpack.c.b16 %v1113, %v1105
    %v1466 = vpack.c.b16 %v1114, %v1106
    %v1467 = vpack.c.b16 %v1115, %v1107
    %v1468 = vpack.c.b16 %v1116, %v1108
    %v1469 = vpack.c.b16 %v1117, %v1109
    %v1470 = vpack.c.b16 %v1118, %v1110
    %v1471 = vpack.c.b16 %v1119, %v1111
    %v1472 = vpack.c.b16 %v1128, %v1120
    %v1473 = vpack.c.b16 %v1129, %v1121
    %v1474 = vpack.c.b16 %v1130, %v1122
    %v1475 = vpack.c.b16 %v1131, %v1123
    %v1476 = vpack.c.b16 %v1132, %v1124
    %v1477 = vpack.c.b16 %v1133, %v1125
    %v1478 = vpack.c.b16 %v1134, %v1126
    %v1479 = vpack.c.b16 %v1135, %v1127
    %v1480 = vpack.c.b16 %v1144, %v1136
    %v1481 = vpack.c.b16 %v1145, %v1137
    %v1482 = vpack.c.b16 %v1146, %v1138
    %v1483 = vpack.c.b16 %v1147, %v1139
    %v1484 = vpack.c.b16 %v1148, %v1140
    %v1485 = vpack.c.b16 %v1149, %v1141
    %v1486 = vpack.c.b16 %v1150, %v1142
    %v1487 = vpack.c.b16 %v1151, %v1143
    %v1488 = vpack.c.b16 %v1160, %v1152
    %v1489 = vpack.c.b16 %v1161, %v1153
    %v1490 = vpack.c.b16 %v1162, %v1154
    %v1491 = vpack.c.b16 %v1163, %v1155
    %v1492 = vpack.c.b16 %v1164, %v1156
    %v1493 = vpack.c.b16 %v1165, %v1157
    %v1494 = vpack.c.b16 %v1166, %v1158
    %v1495 = vpack.c.b16 %v1167, %v1159
    %v1496 = vpack.c.b16 %v1176, %v1168
    %v1497 = vpack.c.b16 %v1177, %v1169
    %v1498 = vpack.c.b16 %v1178, %v1170
    %v1499 = vpack.c.b16 %v1179, %v1171
    %v1500 = vpack.c.b16 %v1180, %v1172
    %v1501 = vpack.c.b16 %v1181, %v1173
    %v1502 = vpack.c.b16 %v1182, %v1174
    %v1503 = vpack.c.b16 %v1183, %v1175
    %v1504 = vpack.c.b16 %v1192, %v1184
    %v1505 = vpack.c.b16 %v1193, %v1185
    %v1506 = vpack.c.b16 %v1194, %v1186
    %v1507 = vpack.c.b16 %v1195, %v1187
    %v1508 = vpack.c.b16 %v1196, %v1188
    %v1509 = vpack.c.b16 %v1197, %v1189
    %v1510 = vpack.c.b16 %v1198, %v1190
    %v1511 = vpack.c.b16 %v1199, %v1191
    %v1512 = vpack.c.b16 %v1208, %v1200
    %v1513 = vpack.c.b16 %v1209, %v1201
    %v1514 = vpack.c.b16 %v1210, %v1202
    %v1515 = vpack.c.b16 %v1211, %v1203
    %v1516 = vpack.c.b16 %v1212, %v1204
    %v1517 = vpack.c.b16 %v1213, %v1205
    %v1518 = vpack.c.b16 %v1214, %v1206
    %v1519 = vpack.c.b16 %v1215, %v1207
    %v1520 = vpack.c.b16 %v1224, %v1216
    %v1521 = vpack.c.b16 %v1225, %v1217
    %v1522 = vpack.c.b16 %v1226, %v1218
    %v1523 = vpack.c.b16 %v1227, %v1219
    %v1524 = vpack.c.b16 %v1228, %v1220
    %v1525 = vpack.c.b16 %v1229, %v1221
    %v1526 = vpack.c.b16 %v1230, %v1222
    %v1527 = vpack.c.b16 %v1231, %v1223
    %v1528 = vpack.c.b16 %v1240, %v1232
    %v1529 = vpack.c.b16 %v1241, %v1233
    %v1530 = vpack.c.b16 %v1242, %v1234
    %v1531 = vpack.c.b16 %v1243, %v1235
    %v1532 = vpack.c.b16 %v1244, %v1236
    %v1533 = vpack.c.b16 %v1245, %v1237
    %v1534 = vpack.c.b16 %v1246, %v1238
    %v1535 = vpack.c.b16 %v1247, %v1239
    %v1536 = vpack.c.b16 %v1256, %v1248
    %v1537 = vpack.c.b16 %v1257, %v1249
    %v1538 = vpack.c.b16 %v1258, %v1250
    %v1539 = vpack.c.b16 %v1259, %v1251
    %v1540 = vpack.c.b16 %v1260, %v1252
    %v1541 = vpack.c.b16 %v1261, %v1253
    %v1542 = vpack.c.b16 %v1262, %v1254
    %v1543 = vpack.c.b16 %v1263, %v1255
    %v1544 = vpack.c.b16 %v1272, %v1264
    %v1545 = vpack.c.b16 %v1273, %v1265
    %v1546 = vpack.c.b16 %v1274, %v1266
    %v1547 = vpack.c.b16 %v1275, %v1267
    %v1548 = vpack.c.b16 %v1276, %v1268
    %v1549 = vpack.c.b16 %v1277, %v1269
    %v1550 = vpack.c.b16 %v1278, %v1270
    %v1551 = vpack.c.b16 %v1279, %v1271
    %v1552 = vpack.c.b16 %v1288, %v1280
    %v1553 = vpack.c.b16 %v1289, %v1281
    %v1554 = vpack.c.b16 %v1290, %v1282
    %v1555 = vpack.c.b16 %v1291, %v1283
    %v1556 = vpack.c.b16 %v1292, %v1284
    %v1557 = vpack.c.b16 %v1293, %v1285
    %v1558 = vpack.c.b16 %v1294, %v1286
    %v1559 = vpack.c.b16 %v1295, %v1287
    %v1560 = vpack.c.b16 %v1304, %v1296
    %v1561 = vpack.c.b16 %v1305, %v1297
    %v1562 = vpack.c.b16 %v1306, %v1298
    %v1563 = vpack.c.b16 %v1307, %v1299
    %v1564 = vpack.c.b16 %v1308, %v1300
    %v1565 = vpack.c.b16 %v1309, %v1301
    %v1566 = vpack.c.b16 %v1310, %v1302
    %v1567 = vpack.c.b16 %v1311, %v1303
    %1824 = vmatpush.bf16.msra.mxu0 %v1368
    %1825 = vmatpush.bf16.msra.mxu0 %v1360
    %1826 = vmatpush.bf16.msra.mxu0 %v1352
    %1827 = vmatpush.bf16.msra.mxu0 %v1344
    %1828 = vmatpush.bf16.msra.mxu0 %v1336
    %1829 = vmatpush.bf16.msra.mxu0 %v1328
    %1830 = vmatpush.bf16.msra.mxu0 %v1320
    %1831 = vmatpush.bf16.msra.mxu0 %v1312
    %1832 = vmatmul.bf16.gmra.mxu0 %v266
    %v1833 = vpop.f32.mrf.mxu0
    %v1834 = vadd.f32 %v528, %v1833
    %v1835 = vpop.f32.mrf.mxu0
    %1836 = vdwg.mxu0
    %1837 = vmatpush.bf16.msra.mxu0 %v1432
    %1838 = vmatpush.bf16.msra.mxu0 %v1424
    %1839 = vmatpush.bf16.msra.mxu0 %v1416
    %1840 = vmatpush.bf16.msra.mxu0 %v1408
    %1841 = vmatpush.bf16.msra.mxu0 %v1400
    %1842 = vmatpush.bf16.msra.mxu0 %v1392
    %1843 = vmatpush.bf16.msra.mxu0 %v1384
    %1844 = vmatpush.bf16.msra.mxu0 %v1376
    %1845 = vmatmul.bf16.gmra.mxu0 %v267
    %v1846 = vpop.f32.mrf.mxu0
    %v1847 = vadd.f32 %v1834, %v1846
    %v1848 = vpop.f32.mrf.mxu0
    %1849 = vdwg.mxu0
    %1850 = vmatpush.bf16.msra.mxu0 %v1496
    %1851 = vmatpush.bf16.msra.mxu0 %v1488
    %1852 = vmatpush.bf16.msra.mxu0 %v1480
    %1853 = vmatpush.bf16.msra.mxu0 %v1472
    %1854 = vmatpush.bf16.msra.mxu0 %v1464
    %1855 = vmatpush.bf16.msra.mxu0 %v1456
    %1856 = vmatpush.bf16.msra.mxu0 %v1448
    %1857 = vmatpush.bf16.msra.mxu0 %v1440
    %1858 = vmatmul.bf16.gmra.mxu0 %v268
    %v1859 = vpop.f32.mrf.mxu0
    %v1860 = vadd.f32 %v1847, %v1859
    %v1861 = vpop.f32.mrf.mxu0
    %1862 = vdwg.mxu0
    %1863 = vmatpush.bf16.msra.mxu0 %v1560
    %1864 = vmatpush.bf16.msra.mxu0 %v1552
    %1865 = vmatpush.bf16.msra.mxu0 %v1544
    %1866 = vmatpush.bf16.msra.mxu0 %v1536
    %1867 = vmatpush.bf16.msra.mxu0 %v1528
    %1868 = vmatpush.bf16.msra.mxu0 %v1520
    %1869 = vmatpush.bf16.msra.mxu0 %v1512
    %1870 = vmatpush.bf16.msra.mxu0 %v1504
    %1871 = vmatmul.bf16.gmra.mxu0 %v269
    %v1872 = vpop.f32.mrf.mxu0
    %v1873 = vadd.f32 %v1860, %v1872
    %v1874 = vpop.f32.mrf.mxu0
    %1875 = vdwg.mxu0
    %1876 = vmatpush.bf16.msra.mxu0 %v1369
    %1877 = vmatpush.bf16.msra.mxu0 %v1361
    %1878 = vmatpush.bf16.msra.mxu0 %v1353
    %1879 = vmatpush.bf16.msra.mxu0 %v1345
    %1880 = vmatpush.bf16.msra.mxu0 %v1337
    %1881 = vmatpush.bf16.msra.mxu0 %v1329
    %1882 = vmatpush.bf16.msra.mxu0 %v1321
    %1883 = vmatpush.bf16.msra.mxu0 %v1313
    %1884 = vmatmul.bf16.gmra.mxu0 %v266
    %v1885 = vpop.f32.mrf.mxu0
    %v1886 = vadd.f32 %v529, %v1885
    %v1887 = vpop.f32.mrf.mxu0
    %1888 = vdwg.mxu0
    %1889 = vmatpush.bf16.msra.mxu0 %v1433
    %1890 = vmatpush.bf16.msra.mxu0 %v1425
    %1891 = vmatpush.bf16.msra.mxu0 %v1417
    %1892 = vmatpush.bf16.msra.mxu0 %v1409
    %1893 = vmatpush.bf16.msra.mxu0 %v1401
    %1894 = vmatpush.bf16.msra.mxu0 %v1393
    %1895 = vmatpush.bf16.msra.mxu0 %v1385
    %1896 = vmatpush.bf16.msra.mxu0 %v1377
    %1897 = vmatmul.bf16.gmra.mxu0 %v267
    %v1898 = vpop.f32.mrf.mxu0
    %v1899 = vadd.f32 %v1886, %v1898
    %v1900 = vpop.f32.mrf.mxu0
    %1901 = vdwg.mxu0
    %1902 = vmatpush.bf16.msra.mxu0 %v1497
    %1903 = vmatpush.bf16.msra.mxu0 %v1489
    %1904 = vmatpush.bf16.msra.mxu0 %v1481
    %1905 = vmatpush.bf16.msra.mxu0 %v1473
    %1906 = vmatpush.bf16.msra.mxu0 %v1465
    %1907 = vmatpush.bf16.msra.mxu0 %v1457
    %1908 = vmatpush.bf16.msra.mxu0 %v1449
    %1909 = vmatpush.bf16.msra.mxu0 %v1441
    %1910 = vmatmul.bf16.gmra.mxu0 %v268
    %v1911 = vpop.f32.mrf.mxu0
    %v1912 = vadd.f32 %v1899, %v1911
    %v1913 = vpop.f32.mrf.mxu0
    %1914 = vdwg.mxu0
    %1915 = vmatpush.bf16.msra.mxu0 %v1561
    %1916 = vmatpush.bf16.msra.mxu0 %v1553
    %1917 = vmatpush.bf16.msra.mxu0 %v1545
    %1918 = vmatpush.bf16.msra.mxu0 %v1537
    %1919 = vmatpush.bf16.msra.mxu0 %v1529
    %1920 = vmatpush.bf16.msra.mxu0 %v1521
    %1921 = vmatpush.bf16.msra.mxu0 %v1513
    %1922 = vmatpush.bf16.msra.mxu0 %v1505
    %1923 = vmatmul.bf16.gmra.mxu0 %v269
    %v1924 = vpop.f32.mrf.mxu0
    %v1925 = vadd.f32 %v1912, %v1924
    %v1926 = vpop.f32.mrf.mxu0
    %1927 = vdwg.mxu0
    %1928 = vmatpush.bf16.msra.mxu0 %v1370
    %1929 = vmatpush.bf16.msra.mxu0 %v1362
    %1930 = vmatpush.bf16.msra.mxu0 %v1354
    %1931 = vmatpush.bf16.msra.mxu0 %v1346
    %1932 = vmatpush.bf16.msra.mxu0 %v1338
    %1933 = vmatpush.bf16.msra.mxu0 %v1330
    %1934 = vmatpush.bf16.msra.mxu0 %v1322
    %1935 = vmatpush.bf16.msra.mxu0 %v1314
    %1936 = vmatmul.bf16.gmra.mxu0 %v266
    %v1937 = vpop.f32.mrf.mxu0
    %v1938 = vadd.f32 %v530, %v1937
    %v1939 = vpop.f32.mrf.mxu0
    %1940 = vdwg.mxu0
    %1941 = vmatpush.bf16.msra.mxu0 %v1434
    %1942 = vmatpush.bf16.msra.mxu0 %v1426
    %1943 = vmatpush.bf16.msra.mxu0 %v1418
    %1944 = vmatpush.bf16.msra.mxu0 %v1410
    %1945 = vmatpush.bf16.msra.mxu0 %v1402
    %1946 = vmatpush.bf16.msra.mxu0 %v1394
    %1947 = vmatpush.bf16.msra.mxu0 %v1386
    %1948 = vmatpush.bf16.msra.mxu0 %v1378
    %1949 = vmatmul.bf16.gmra.mxu0 %v267
    %v1950 = vpop.f32.mrf.mxu0
    %v1951 = vadd.f32 %v1938, %v1950
    %v1952 = vpop.f32.mrf.mxu0
    %1953 = vdwg.mxu0
    %1954 = vmatpush.bf16.msra.mxu0 %v1498
    %1955 = vmatpush.bf16.msra.mxu0 %v1490
    %1956 = vmatpush.bf16.msra.mxu0 %v1482
    %1957 = vmatpush.bf16.msra.mxu0 %v1474
    %1958 = vmatpush.bf16.msra.mxu0 %v1466
    %1959 = vmatpush.bf16.msra.mxu0 %v1458
    %1960 = vmatpush.bf16.msra.mxu0 %v1450
    %1961 = vmatpush.bf16.msra.mxu0 %v1442
    %1962 = vmatmul.bf16.gmra.mxu0 %v268
    %v1963 = vpop.f32.mrf.mxu0
    %v1964 = vadd.f32 %v1951, %v1963
    %v1965 = vpop.f32.mrf.mxu0
    %1966 = vdwg.mxu0
    %1967 = vmatpush.bf16.msra.mxu0 %v1562
    %1968 = vmatpush.bf16.msra.mxu0 %v1554
    %1969 = vmatpush.bf16.msra.mxu0 %v1546
    %1970 = vmatpush.bf16.msra.mxu0 %v1538
    %1971 = vmatpush.bf16.msra.mxu0 %v1530
    %1972 = vmatpush.bf16.msra.mxu0 %v1522
    %1973 = vmatpush.bf16.msra.mxu0 %v1514
    %1974 = vmatpush.bf16.msra.mxu0 %v1506
    %1975 = vmatmul.bf16.gmra.mxu0 %v269
    %v1976 = vpop.f32.mrf.mxu0
    %v1977 = vadd.f32 %v1964, %v1976
    %v1978 = vpop.f32.mrf.mxu0
    %1979 = vdwg.mxu0
    %1980 = vmatpush.bf16.msra.mxu0 %v1371
    %1981 = vmatpush.bf16.msra.mxu0 %v1363
    %1982 = vmatpush.bf16.msra.mxu0 %v1355
    %1983 = vmatpush.bf16.msra.mxu0 %v1347
    %1984 = vmatpush.bf16.msra.mxu0 %v1339
    %1985 = vmatpush.bf16.msra.mxu0 %v1331
    %1986 = vmatpush.bf16.msra.mxu0 %v1323
    %1987 = vmatpush.bf16.msra.mxu0 %v1315
    %1988 = vmatmul.bf16.gmra.mxu0 %v266
    %v1989 = vpop.f32.mrf.mxu0
    %v1990 = vadd.f32 %v531, %v1989
    %v1991 = vpop.f32.mrf.mxu0
    %1992 = vdwg.mxu0
    %1993 = vmatpush.bf16.msra.mxu0 %v1435
    %1994 = vmatpush.bf16.msra.mxu0 %v1427
    %1995 = vmatpush.bf16.msra.mxu0 %v1419
    %1996 = vmatpush.bf16.msra.mxu0 %v1411
    %1997 = vmatpush.bf16.msra.mxu0 %v1403
    %1998 = vmatpush.bf16.msra.mxu0 %v1395
    %1999 = vmatpush.bf16.msra.mxu0 %v1387
    %2000 = vmatpush.bf16.msra.mxu0 %v1379
    %2001 = vmatmul.bf16.gmra.mxu0 %v267
    %v2002 = vpop.f32.mrf.mxu0
    %v2003 = vadd.f32 %v1990, %v2002
    %v2004 = vpop.f32.mrf.mxu0
    %2005 = vdwg.mxu0
    %2006 = vmatpush.bf16.msra.mxu0 %v1499
    %2007 = vmatpush.bf16.msra.mxu0 %v1491
    %2008 = vmatpush.bf16.msra.mxu0 %v1483
    %2009 = vmatpush.bf16.msra.mxu0 %v1475
    %2010 = vmatpush.bf16.msra.mxu0 %v1467
    %2011 = vmatpush.bf16.msra.mxu0 %v1459
    %2012 = vmatpush.bf16.msra.mxu0 %v1451
    %2013 = vmatpush.bf16.msra.mxu0 %v1443
    %2014 = vmatmul.bf16.gmra.mxu0 %v268
    %v2015 = vpop.f32.mrf.mxu0
    %v2016 = vadd.f32 %v2003, %v2015
    %v2017 = vpop.f32.mrf.mxu0
    %2018 = vdwg.mxu0
    %2019 = vmatpush.bf16.msra.mxu0 %v1563
    %2020 = vmatpush.bf16.msra.mxu0 %v1555
    %2021 = vmatpush.bf16.msra.mxu0 %v1547
    %2022 = vmatpush.bf16.msra.mxu0 %v1539
    %2023 = vmatpush.bf16.msra.mxu0 %v1531
    %2024 = vmatpush.bf16.msra.mxu0 %v1523
    %2025 = vmatpush.bf16.msra.mxu0 %v1515
    %2026 = vmatpush.bf16.msra.mxu0 %v1507
    %2027 = vmatmul.bf16.gmra.mxu0 %v269
    %v2028 = vpop.f32.mrf.mxu0
    %v2029 = vadd.f32 %v2016, %v2028
    %v2030 = vpop.f32.mrf.mxu0
    %2031 = vdwg.mxu0
    %2032 = vmatpush.bf16.msra.mxu0 %v1372
    %2033 = vmatpush.bf16.msra.mxu0 %v1364
    %2034 = vmatpush.bf16.msra.mxu0 %v1356
    %2035 = vmatpush.bf16.msra.mxu0 %v1348
    %2036 = vmatpush.bf16.msra.mxu0 %v1340
    %2037 = vmatpush.bf16.msra.mxu0 %v1332
    %2038 = vmatpush.bf16.msra.mxu0 %v1324
    %2039 = vmatpush.bf16.msra.mxu0 %v1316
    %2040 = vmatmul.bf16.gmra.mxu0 %v266
    %v2041 = vpop.f32.mrf.mxu0
    %v2042 = vadd.f32 %v532, %v2041
    %v2043 = vpop.f32.mrf.mxu0
    %2044 = vdwg.mxu0
    %2045 = vmatpush.bf16.msra.mxu0 %v1436
    %2046 = vmatpush.bf16.msra.mxu0 %v1428
    %2047 = vmatpush.bf16.msra.mxu0 %v1420
    %2048 = vmatpush.bf16.msra.mxu0 %v1412
    %2049 = vmatpush.bf16.msra.mxu0 %v1404
    %2050 = vmatpush.bf16.msra.mxu0 %v1396
    %2051 = vmatpush.bf16.msra.mxu0 %v1388
    %2052 = vmatpush.bf16.msra.mxu0 %v1380
    %2053 = vmatmul.bf16.gmra.mxu0 %v267
    %v2054 = vpop.f32.mrf.mxu0
    %v2055 = vadd.f32 %v2042, %v2054
    %v2056 = vpop.f32.mrf.mxu0
    %2057 = vdwg.mxu0
    %2058 = vmatpush.bf16.msra.mxu0 %v1500
    %2059 = vmatpush.bf16.msra.mxu0 %v1492
    %2060 = vmatpush.bf16.msra.mxu0 %v1484
    %2061 = vmatpush.bf16.msra.mxu0 %v1476
    %2062 = vmatpush.bf16.msra.mxu0 %v1468
    %2063 = vmatpush.bf16.msra.mxu0 %v1460
    %2064 = vmatpush.bf16.msra.mxu0 %v1452
    %2065 = vmatpush.bf16.msra.mxu0 %v1444
    %2066 = vmatmul.bf16.gmra.mxu0 %v268
    %v2067 = vpop.f32.mrf.mxu0
    %v2068 = vadd.f32 %v2055, %v2067
    %v2069 = vpop.f32.mrf.mxu0
    %2070 = vdwg.mxu0
    %2071 = vmatpush.bf16.msra.mxu0 %v1564
    %2072 = vmatpush.bf16.msra.mxu0 %v1556
    %2073 = vmatpush.bf16.msra.mxu0 %v1548
    %2074 = vmatpush.bf16.msra.mxu0 %v1540
    %2075 = vmatpush.bf16.msra.mxu0 %v1532
    %2076 = vmatpush.bf16.msra.mxu0 %v1524
    %2077 = vmatpush.bf16.msra.mxu0 %v1516
    %2078 = vmatpush.bf16.msra.mxu0 %v1508
    %2079 = vmatmul.bf16.gmra.mxu0 %v269
    %v2080 = vpop.f32.mrf.mxu0
    %v2081 = vadd.f32 %v2068, %v2080
    %v2082 = vpop.f32.mrf.mxu0
    %2083 = vdwg.mxu0
    %2084 = vmatpush.bf16.msra.mxu0 %v1373
    %2085 = vmatpush.bf16.msra.mxu0 %v1365
    %2086 = vmatpush.bf16.msra.mxu0 %v1357
    %2087 = vmatpush.bf16.msra.mxu0 %v1349
    %2088 = vmatpush.bf16.msra.mxu0 %v1341
    %2089 = vmatpush.bf16.msra.mxu0 %v1333
    %2090 = vmatpush.bf16.msra.mxu0 %v1325
    %2091 = vmatpush.bf16.msra.mxu0 %v1317
    %2092 = vmatmul.bf16.gmra.mxu0 %v266
    %v2093 = vpop.f32.mrf.mxu0
    %v2094 = vadd.f32 %v533, %v2093
    %v2095 = vpop.f32.mrf.mxu0
    %2096 = vdwg.mxu0
    %2097 = vmatpush.bf16.msra.mxu0 %v1437
    %2098 = vmatpush.bf16.msra.mxu0 %v1429
    %2099 = vmatpush.bf16.msra.mxu0 %v1421
    %2100 = vmatpush.bf16.msra.mxu0 %v1413
    %2101 = vmatpush.bf16.msra.mxu0 %v1405
    %2102 = vmatpush.bf16.msra.mxu0 %v1397
    %2103 = vmatpush.bf16.msra.mxu0 %v1389
    %2104 = vmatpush.bf16.msra.mxu0 %v1381
    %2105 = vmatmul.bf16.gmra.mxu0 %v267
    %v2106 = vpop.f32.mrf.mxu0
    %v2107 = vadd.f32 %v2094, %v2106
    %v2108 = vpop.f32.mrf.mxu0
    %2109 = vdwg.mxu0
    %2110 = vmatpush.bf16.msra.mxu0 %v1501
    %2111 = vmatpush.bf16.msra.mxu0 %v1493
    %2112 = vmatpush.bf16.msra.mxu0 %v1485
    %2113 = vmatpush.bf16.msra.mxu0 %v1477
    %2114 = vmatpush.bf16.msra.mxu0 %v1469
    %2115 = vmatpush.bf16.msra.mxu0 %v1461
    %2116 = vmatpush.bf16.msra.mxu0 %v1453
    %2117 = vmatpush.bf16.msra.mxu0 %v1445
    %2118 = vmatmul.bf16.gmra.mxu0 %v268
    %v2119 = vpop.f32.mrf.mxu0
    %v2120 = vadd.f32 %v2107, %v2119
    %v2121 = vpop.f32.mrf.mxu0
    %2122 = vdwg.mxu0
    %2123 = vmatpush.bf16.msra.mxu0 %v1565
    %2124 = vmatpush.bf16.msra.mxu0 %v1557
    %2125 = vmatpush.bf16.msra.mxu0 %v1549
    %2126 = vmatpush.bf16.msra.mxu0 %v1541
    %2127 = vmatpush.bf16.msra.mxu0 %v1533
    %2128 = vmatpush.bf16.msra.mxu0 %v1525
    %2129 = vmatpush.bf16.msra.mxu0 %v1517
    %2130 = vmatpush.bf16.msra.mxu0 %v1509
    %2131 = vmatmul.bf16.gmra.mxu0 %v269
    %v2132 = vpop.f32.mrf.mxu0
    %v2133 = vadd.f32 %v2120, %v2132
    %v2134 = vpop.f32.mrf.mxu0
    %2135 = vdwg.mxu0
    %2136 = vmatpush.bf16.msra.mxu0 %v1374
    %2137 = vmatpush.bf16.msra.mxu0 %v1366
    %2138 = vmatpush.bf16.msra.mxu0 %v1358
    %2139 = vmatpush.bf16.msra.mxu0 %v1350
    %2140 = vmatpush.bf16.msra.mxu0 %v1342
    %2141 = vmatpush.bf16.msra.mxu0 %v1334
    %2142 = vmatpush.bf16.msra.mxu0 %v1326
    %2143 = vmatpush.bf16.msra.mxu0 %v1318
    %2144 = vmatmul.bf16.gmra.mxu0 %v266
    %v2145 = vpop.f32.mrf.mxu0
    %v2146 = vadd.f32 %v534, %v2145
    %v2147 = vpop.f32.mrf.mxu0
    %2148 = vdwg.mxu0
    %2149 = vmatpush.bf16.msra.mxu0 %v1438
    %2150 = vmatpush.bf16.msra.mxu0 %v1430
    %2151 = vmatpush.bf16.msra.mxu0 %v1422
    %2152 = vmatpush.bf16.msra.mxu0 %v1414
    %2153 = vmatpush.bf16.msra.mxu0 %v1406
    %2154 = vmatpush.bf16.msra.mxu0 %v1398
    %2155 = vmatpush.bf16.msra.mxu0 %v1390
    %2156 = vmatpush.bf16.msra.mxu0 %v1382
    %2157 = vmatmul.bf16.gmra.mxu0 %v267
    %v2158 = vpop.f32.mrf.mxu0
    %v2159 = vadd.f32 %v2146, %v2158
    %v2160 = vpop.f32.mrf.mxu0
    %2161 = vdwg.mxu0
    %2162 = vmatpush.bf16.msra.mxu0 %v1502
    %2163 = vmatpush.bf16.msra.mxu0 %v1494
    %2164 = vmatpush.bf16.msra.mxu0 %v1486
    %2165 = vmatpush.bf16.msra.mxu0 %v1478
    %2166 = vmatpush.bf16.msra.mxu0 %v1470
    %2167 = vmatpush.bf16.msra.mxu0 %v1462
    %2168 = vmatpush.bf16.msra.mxu0 %v1454
    %2169 = vmatpush.bf16.msra.mxu0 %v1446
    %2170 = vmatmul.bf16.gmra.mxu0 %v268
    %v2171 = vpop.f32.mrf.mxu0
    %v2172 = vadd.f32 %v2159, %v2171
    %v2173 = vpop.f32.mrf.mxu0
    %2174 = vdwg.mxu0
    %2175 = vmatpush.bf16.msra.mxu0 %v1566
    %2176 = vmatpush.bf16.msra.mxu0 %v1558
    %2177 = vmatpush.bf16.msra.mxu0 %v1550
    %2178 = vmatpush.bf16.msra.mxu0 %v1542
    %2179 = vmatpush.bf16.msra.mxu0 %v1534
    %2180 = vmatpush.bf16.msra.mxu0 %v1526
    %2181 = vmatpush.bf16.msra.mxu0 %v1518
    %2182 = vmatpush.bf16.msra.mxu0 %v1510
    %2183 = vmatmul.bf16.gmra.mxu0 %v269
    %v2184 = vpop.f32.mrf.mxu0
    %v2185 = vadd.f32 %v2172, %v2184
    %v2186 = vpop.f32.mrf.mxu0
    %2187 = vdwg.mxu0
    %2188 = vmatpush.bf16.msra.mxu0 %v1375
    %2189 = vmatpush.bf16.msra.mxu0 %v1367
    %2190 = vmatpush.bf16.msra.mxu0 %v1359
    %2191 = vmatpush.bf16.msra.mxu0 %v1351
    %2192 = vmatpush.bf16.msra.mxu0 %v1343
    %2193 = vmatpush.bf16.msra.mxu0 %v1335
    %2194 = vmatpush.bf16.msra.mxu0 %v1327
    %2195 = vmatpush.bf16.msra.mxu0 %v1319
    %2196 = vmatmul.bf16.gmra.mxu0 %v266
    %v2197 = vpop.f32.mrf.mxu0
    %v2198 = vadd.f32 %v535, %v2197
    %v2199 = vpop.f32.mrf.mxu0
    %2200 = vdwg.mxu0
    %2201 = vmatpush.bf16.msra.mxu0 %v1439
    %2202 = vmatpush.bf16.msra.mxu0 %v1431
    %2203 = vmatpush.bf16.msra.mxu0 %v1423
    %2204 = vmatpush.bf16.msra.mxu0 %v1415
    %2205 = vmatpush.bf16.msra.mxu0 %v1407
    %2206 = vmatpush.bf16.msra.mxu0 %v1399
    %2207 = vmatpush.bf16.msra.mxu0 %v1391
    %2208 = vmatpush.bf16.msra.mxu0 %v1383
    %2209 = vmatmul.bf16.gmra.mxu0 %v267
    %v2210 = vpop.f32.mrf.mxu0
    %v2211 = vadd.f32 %v2198, %v2210
    %v2212 = vpop.f32.mrf.mxu0
    %2213 = vdwg.mxu0
    %2214 = vmatpush.bf16.msra.mxu0 %v1503
    %2215 = vmatpush.bf16.msra.mxu0 %v1495
    %2216 = vmatpush.bf16.msra.mxu0 %v1487
    %2217 = vmatpush.bf16.msra.mxu0 %v1479
    %2218 = vmatpush.bf16.msra.mxu0 %v1471
    %2219 = vmatpush.bf16.msra.mxu0 %v1463
    %2220 = vmatpush.bf16.msra.mxu0 %v1455
    %2221 = vmatpush.bf16.msra.mxu0 %v1447
    %2222 = vmatmul.bf16.gmra.mxu0 %v268
    %v2223 = vpop.f32.mrf.mxu0
    %v2224 = vadd.f32 %v2211, %v2223
    %v2225 = vpop.f32.mrf.mxu0
    %2226 = vdwg.mxu0
    %2227 = vmatpush.bf16.msra.mxu0 %v1567
    %2228 = vmatpush.bf16.msra.mxu0 %v1559
    %2229 = vmatpush.bf16.msra.mxu0 %v1551
    %2230 = vmatpush.bf16.msra.mxu0 %v1543
    %2231 = vmatpush.bf16.msra.mxu0 %v1535
    %2232 = vmatpush.bf16.msra.mxu0 %v1527
    %2233 = vmatpush.bf16.msra.mxu0 %v1519
    %2234 = vmatpush.bf16.msra.mxu0 %v1511
    %2235 = vmatmul.bf16.gmra.mxu0 %v269
    %v2236 = vpop.f32.mrf.mxu0
    %v2237 = vadd.f32 %v2224, %v2236
    %v2238 = vpop.f32.mrf.mxu0
    %2239 = vdwg.mxu0
    %v2240 = vtanh.pop %v1873
    %v2241 = vtanh.pop %v1925
    %v2242 = vtanh.pop %v1977
    %v2243 = vtanh.pop %v2029
    %2244 = vst [vmem:[%s8] sm:$0xff] %v2081
    %2245 = vst [vmem:[%s8 + $0x8] sm:$0xff] %v2133
    %2246 = vst [vmem:[%s8 + $0x10] sm:$0xff] %v2185
    %2247 = vst [vmem:[%s8 + $0x18] sm:$0xff] %v2237
    %2248 = vst [vmem:[%s9] sm:$0xff] %v2240
    %2249 = vst [vmem:[%s9 + $0x8] sm:$0xff] %v2241
    %2250 = vst [vmem:[%s9 + $0x10] sm:$0xff] %v2242
    %2251 = vst [vmem:[%s9 + $0x18] sm:$0xff] %v2243
    %vm2252 = vcmask 1043456
    %v2253 = vsel %vm2252, %v2240, -inf
    %v2254 = vrot.slane %v2253, 4
    %v2255 = vmax.f32 %v2253, %v2254
    %v2256 = vrot.slane %v2255, 2
    %v2257 = vmax.f32 %v2255, %v2256
    %v2258 = vrot.slane %v2257, 1
    %v2259 = vmax.f32 %v2257, %v2258
    %v2260 = vsel %vm2252, %v2241, -inf
    %v2261 = vrot.slane %v2260, 4
    %v2262 = vmax.f32 %v2260, %v2261
    %v2263 = vrot.slane %v2262, 2
    %v2264 = vmax.f32 %v2262, %v2263
    %v2265 = vrot.slane %v2264, 1
    %v2266 = vmax.f32 %v2264, %v2265
    %v2267 = vsel %vm2252, %v2242, -inf
    %v2268 = vrot.slane %v2267, 4
    %v2269 = vmax.f32 %v2267, %v2268
    %v2270 = vrot.slane %v2269, 2
    %v2271 = vmax.f32 %v2269, %v2270
    %v2272 = vrot.slane %v2271, 1
    %v2273 = vmax.f32 %v2271, %v2272
    %v2274 = vsel %vm2252, %v2243, -inf
    %v2275 = vrot.slane %v2274, 4
    %v2276 = vmax.f32 %v2274, %v2275
    %v2277 = vrot.slane %v2276, 2
    %v2278 = vmax.f32 %v2276, %v2277
    %v2279 = vrot.slane %v2278, 1
    %v2280 = vmax.f32 %v2278, %v2279
    %v2281 = vsub.f32 %v2240, %v2259
    %v2282 = vsub.f32 %v2241, %v2266
    %v2283 = vsub.f32 %v2242, %v2273
    %v2284 = vsub.f32 %v2243, %v2280
    %v2285 = vmul.f32 %v2281, 1.442695
    %v2286 = vpow.pop %v2285
    %v2287 = vmul.f32 %v2282, 1.442695
    %v2288 = vpow.pop %v2287
    %v2289 = vmul.f32 %v2283, 1.442695
    %v2290 = vpow.pop %v2289
    %v2291 = vmul.f32 %v2284, 1.442695
    %v2292 = vpow.pop %v2291
    %v2293 = vsel %vm2252, %v2286, 0.0
    %v2294 = vrot.slane %v2293, 4
    %v2295 = vadd.f32 %v2293, %v2294
    %v2296 = vrot.slane %v2295, 2
    %v2297 = vadd.f32 %v2295, %v2296
    %v2298 = vrot.slane %v2297, 1
    %v2299 = vadd.f32 %v2297, %v2298
    %v2300 = vsel %vm2252, %v2288, 0.0
    %v2301 = vrot.slane %v2300, 4
    %v2302 = vadd.f32 %v2300, %v2301
    %v2303 = vrot.slane %v2302, 2
    %v2304 = vadd.f32 %v2302, %v2303
    %v2305 = vrot.slane %v2304, 1
    %v2306 = vadd.f32 %v2304, %v2305
    %v2307 = vsel %vm2252, %v2290, 0.0
    %v2308 = vrot.slane %v2307, 4
    %v2309 = vadd.f32 %v2307, %v2308
    %v2310 = vrot.slane %v2309, 2
    %v2311 = vadd.f32 %v2309, %v2310
    %v2312 = vrot.slane %v2311, 1
    %v2313 = vadd.f32 %v2311, %v2312
    %v2314 = vsel %vm2252, %v2292, 0.0
    %v2315 = vrot.slane %v2314, 4
    %v2316 = vadd.f32 %v2314, %v2315
    %v2317 = vrot.slane %v2316, 2
    %v2318 = vadd.f32 %v2316, %v2317
    %v2319 = vrot.slane %v2318, 1
    %v2320 = vadd.f32 %v2318, %v2319
    %v2321 = vrcp.pop %v2299
    %v2322 = vrcp.pop %v2306
    %v2323 = vrcp.pop %v2313
    %v2324 = vrcp.pop %v2320
    %v2325 = vmul.f32 %v2286, %v2321
    %v2326 = vmul.f32 %v2288, %v2322
    %v2327 = vmul.f32 %v2290, %v2323
    %v2328 = vmul.f32 %v2292, %v2324
    %v2329 = vmul.f32 %v2081, %v2325
    %v2330 = vmul.f32 %v2133, %v2326
    %v2331 = vmul.f32 %v2185, %v2327
    %v2332 = vmul.f32 %v2237, %v2328
    %v2333 = vsel %vm2252, %v2329, 0.0
    %v2334 = vrot.slane %v2333, 4
    %v2335 = vadd.f32 %v2333, %v2334
    %v2336 = vrot.slane %v2335, 2
    %v2337 = vadd.f32 %v2335, %v2336
    %v2338 = vrot.slane %v2337, 1
    %v2339 = vadd.f32 %v2337, %v2338
    %v2340 = vsel %vm2252, %v2330, 0.0
    %v2341 = vrot.slane %v2340, 4
    %v2342 = vadd.f32 %v2340, %v2341
    %v2343 = vrot.slane %v2342, 2
    %v2344 = vadd.f32 %v2342, %v2343
    %v2345 = vrot.slane %v2344, 1
    %v2346 = vadd.f32 %v2344, %v2345
    %v2347 = vsel %vm2252, %v2331, 0.0
    %v2348 = vrot.slane %v2347, 4
    %v2349 = vadd.f32 %v2347, %v2348
    %v2350 = vrot.slane %v2349, 2
    %v2351 = vadd.f32 %v2349, %v2350
    %v2352 = vrot.slane %v2351, 1
    %v2353 = vadd.f32 %v2351, %v2352
    %v2354 = vsel %vm2252, %v2332, 0.0
    %v2355 = vrot.slane %v2354, 4
    %v2356 = vadd.f32 %v2354, %v2355
    %v2357 = vrot.slane %v2356, 2
    %v2358 = vadd.f32 %v2356, %v2357
    %v2359 = vrot.slane %v2358, 1
    %v2360 = vadd.f32 %v2358, %v2359
    %v2365 = vrot.slane %v2346, 7
    %v2366 = vrot.slane %v2353, 6
    %v2367 = vrot.slane %v2360, 5
    %vm2368 = vcmask 1040384
    %v2369 = vsel %vm2368, %v2339, %v2365
    %vm2370 = vcmask 1042434
    %v2371 = vsel %vm2370, %v2366, %v2367
    %vm2372 = vcmask 1041408
    %v2373 = vsel %vm2372, %v2369, %v2371
    %v2375 = vlaneseq
    %vm2376 = vcmp.ge.s32.totalorder %v2375, 0
    %vm2377 = vcmp.lt.s32.totalorder %v2375, 512
    %vm2378 = vmand %vm2376, %vm2377
    %2379 = vst.msk [vmem:[#allocation6] ss:$2 sm:$0xf] %vm2378, %v2373
    %v2380 = vxor.u32 %v2081, 2147483648
    %v2381 = vxor.u32 %v2133, 2147483648
    %v2382 = vxor.u32 %v2185, 2147483648
    %v2383 = vxor.u32 %v2237, 2147483648
    %v2384 = vmul.f32 %v2380, 1.442695
    %v2385 = vpow.pop %v2384
    %v2386 = vmul.f32 %v2381, 1.442695
    %v2387 = vpow.pop %v2386
    %v2388 = vmul.f32 %v2382, 1.442695
    %v2389 = vpow.pop %v2388
    %v2390 = vmul.f32 %v2383, 1.442695
    %v2391 = vpow.pop %v2390
    %v2392 = vadd.f32 %v2385, 1.0
    %v2393 = vadd.f32 %v2387, 1.0
    %v2394 = vadd.f32 %v2389, 1.0
    %v2395 = vadd.f32 %v2391, 1.0
    %v2396 = vrcp.pop %v2392
    %v2397 = vmul.f32 %v2392, %v2396
    %v2398 = vsub.f32 1.0, %v2397
    %v2399 = vmul.f32 %v2396, %v2398
    %v2400 = vadd.f32 %v2396, %v2399
    %vm2401 = vweird.f32 %v2392
    %vm2402 = vweird.f32 %v2396
    %vm2403 = vmor %vm2401, %vm2402
    %v2404 = vsel %vm2403, %v2396, %v2400
    %v2405 = vand.u32 2147483647, %v2392
    %vm2406 = vcmp.eq.f32.partialorder %v2405, 8.507059e+37
    %v2407 = vand.u32 %v2392, 2147483648
    %v2408 = vor.u32 1.1754944e-38, %v2407
    %v2409 = vsel %vm2406, %v2408, %v2404
    %v2410 = vmul.f32 1.0, %v2409
    %v2411 = vrcp.pop %v2393
    %v2412 = vmul.f32 %v2393, %v2411
    %v2413 = vsub.f32 1.0, %v2412
    %v2414 = vmul.f32 %v2411, %v2413
    %v2415 = vadd.f32 %v2411, %v2414
    %vm2416 = vweird.f32 %v2393
    %vm2417 = vweird.f32 %v2411
    %vm2418 = vmor %vm2416, %vm2417
    %v2419 = vsel %vm2418, %v2411, %v2415
    %v2420 = vand.u32 2147483647, %v2393
    %vm2421 = vcmp.eq.f32.partialorder %v2420, 8.507059e+37
    %v2422 = vand.u32 %v2393, 2147483648
    %v2423 = vor.u32 1.1754944e-38, %v2422
    %v2424 = vsel %vm2421, %v2423, %v2419
    %v2425 = vmul.f32 1.0, %v2424
    %v2426 = vrcp.pop %v2394
    %v2427 = vmul.f32 %v2394, %v2426
    %v2428 = vsub.f32 1.0, %v2427
    %v2429 = vmul.f32 %v2426, %v2428
    %v2430 = vadd.f32 %v2426, %v2429
    %vm2431 = vweird.f32 %v2394
    %vm2432 = vweird.f32 %v2426
    %vm2433 = vmor %vm2431, %vm2432
    %v2434 = vsel %vm2433, %v2426, %v2430
    %v2435 = vand.u32 2147483647, %v2394
    %vm2436 = vcmp.eq.f32.partialorder %v2435, 8.507059e+37
    %v2437 = vand.u32 %v2394, 2147483648
    %v2438 = vor.u32 1.1754944e-38, %v2437
    %v2439 = vsel %vm2436, %v2438, %v2434
    %v2440 = vmul.f32 1.0, %v2439
    %v2441 = vrcp.pop %v2395
    %v2442 = vmul.f32 %v2395, %v2441
    %v2443 = vsub.f32 1.0, %v2442
    %v2444 = vmul.f32 %v2441, %v2443
    %v2445 = vadd.f32 %v2441, %v2444
    %vm2446 = vweird.f32 %v2395
    %vm2447 = vweird.f32 %v2441
    %vm2448 = vmor %vm2446, %vm2447
    %v2449 = vsel %vm2448, %v2441, %v2445
    %v2450 = vand.u32 2147483647, %v2395
    %vm2451 = vcmp.eq.f32.partialorder %v2450, 8.507059e+37
    %v2452 = vand.u32 %v2395, 2147483648
    %v2453 = vor.u32 1.1754944e-38, %v2452
    %v2454 = vsel %vm2451, %v2453, %v2449
    %v2455 = vmul.f32 1.0, %v2454
    %v2456 = vmul.f32 %v2410, %v2325
    %v2457 = vmul.f32 %v2425, %v2326
    %v2458 = vmul.f32 %v2440, %v2327
    %v2459 = vmul.f32 %v2455, %v2328
    %v2460 = vsel %vm2252, %v2456, 0.0
    %v2461 = vrot.slane %v2460, 4
    %v2462 = vadd.f32 %v2460, %v2461
    %v2463 = vrot.slane %v2462, 2
    %v2464 = vadd.f32 %v2462, %v2463
    %v2465 = vrot.slane %v2464, 1
    %v2466 = vadd.f32 %v2464, %v2465
    %v2467 = vsel %vm2252, %v2457, 0.0
    %v2468 = vrot.slane %v2467, 4
    %v2469 = vadd.f32 %v2467, %v2468
    %v2470 = vrot.slane %v2469, 2
    %v2471 = vadd.f32 %v2469, %v2470
    %v2472 = vrot.slane %v2471, 1
    %v2473 = vadd.f32 %v2471, %v2472
    %v2474 = vsel %vm2252, %v2458, 0.0
    %v2475 = vrot.slane %v2474, 4
    %v2476 = vadd.f32 %v2474, %v2475
    %v2477 = vrot.slane %v2476, 2
    %v2478 = vadd.f32 %v2476, %v2477
    %v2479 = vrot.slane %v2478, 1
    %v2480 = vadd.f32 %v2478, %v2479
    %v2481 = vsel %vm2252, %v2459, 0.0
    %v2482 = vrot.slane %v2481, 4
    %v2483 = vadd.f32 %v2481, %v2482
    %v2484 = vrot.slane %v2483, 2
    %v2485 = vadd.f32 %v2483, %v2484
    %v2486 = vrot.slane %v2485, 1
    %v2487 = vadd.f32 %v2485, %v2486
    %v2492 = vrot.slane %v2473, 7
    %v2493 = vrot.slane %v2480, 6
    %v2494 = vrot.slane %v2487, 5
    %v2495 = vsel %vm2368, %v2466, %v2492
    %v2496 = vsel %vm2370, %v2493, %v2494
    %v2497 = vsel %vm2372, %v2495, %v2496
    %2499 = vst.msk [vmem:[#allocation7] ss:$2 sm:$0xf] %vm2378, %v2497
    %vm2500 = vcmask 1047556
    %v2501 = vsel %vm2500, %v2240, -inf
    %v2502 = vrot.slane %v2501, 4
    %v2503 = vmax.f32 %v2501, %v2502
    %v2504 = vrot.slane %v2503, 2
    %v2505 = vmax.f32 %v2503, %v2504
    %v2506 = vrot.slane %v2505, 1
    %v2507 = vmax.f32 %v2505, %v2506
    %v2508 = vsel %vm2500, %v2241, -inf
    %v2509 = vrot.slane %v2508, 4
    %v2510 = vmax.f32 %v2508, %v2509
    %v2511 = vrot.slane %v2510, 2
    %v2512 = vmax.f32 %v2510, %v2511
    %v2513 = vrot.slane %v2512, 1
    %v2514 = vmax.f32 %v2512, %v2513
    %v2515 = vsel %vm2500, %v2242, -inf
    %v2516 = vrot.slane %v2515, 4
    %v2517 = vmax.f32 %v2515, %v2516
    %v2518 = vrot.slane %v2517, 2
    %v2519 = vmax.f32 %v2517, %v2518
    %v2520 = vrot.slane %v2519, 1
    %v2521 = vmax.f32 %v2519, %v2520
    %v2522 = vsel %vm2500, %v2243, -inf
    %v2523 = vrot.slane %v2522, 4
    %v2524 = vmax.f32 %v2522, %v2523
    %v2525 = vrot.slane %v2524, 2
    %v2526 = vmax.f32 %v2524, %v2525
    %v2527 = vrot.slane %v2526, 1
    %v2528 = vmax.f32 %v2526, %v2527
    %v2529 = vsub.f32 %v2240, %v2507
    %v2530 = vsub.f32 %v2241, %v2514
    %v2531 = vsub.f32 %v2242, %v2521
    %v2532 = vsub.f32 %v2243, %v2528
    %v2533 = vmul.f32 %v2529, 1.442695
    %v2534 = vpow.pop %v2533
    %v2535 = vmul.f32 %v2530, 1.442695
    %v2536 = vpow.pop %v2535
    %v2537 = vmul.f32 %v2531, 1.442695
    %v2538 = vpow.pop %v2537
    %v2539 = vmul.f32 %v2532, 1.442695
    %v2540 = vpow.pop %v2539
    %v2545 = vrot.slane %v2534, 4
    %v2546 = vrot.slane %v2536, 4
    %v2547 = vrot.slane %v2538, 4
    %v2548 = vrot.slane %v2540, 4
    %v2553 = vsel %vm2252, %v2545, 0.0
    %v2554 = vrot.slane %v2553, 4
    %v2555 = vadd.f32 %v2553, %v2554
    %v2556 = vrot.slane %v2555, 2
    %v2557 = vadd.f32 %v2555, %v2556
    %v2558 = vrot.slane %v2557, 1
    %v2559 = vadd.f32 %v2557, %v2558
    %v2560 = vsel %vm2252, %v2546, 0.0
    %v2561 = vrot.slane %v2560, 4
    %v2562 = vadd.f32 %v2560, %v2561
    %v2563 = vrot.slane %v2562, 2
    %v2564 = vadd.f32 %v2562, %v2563
    %v2565 = vrot.slane %v2564, 1
    %v2566 = vadd.f32 %v2564, %v2565
    %v2567 = vsel %vm2252, %v2547, 0.0
    %v2568 = vrot.slane %v2567, 4
    %v2569 = vadd.f32 %v2567, %v2568
    %v2570 = vrot.slane %v2569, 2
    %v2571 = vadd.f32 %v2569, %v2570
    %v2572 = vrot.slane %v2571, 1
    %v2573 = vadd.f32 %v2571, %v2572
    %v2574 = vsel %vm2252, %v2548, 0.0
    %v2575 = vrot.slane %v2574, 4
    %v2576 = vadd.f32 %v2574, %v2575
    %v2577 = vrot.slane %v2576, 2
    %v2578 = vadd.f32 %v2576, %v2577
    %v2579 = vrot.slane %v2578, 1
    %v2580 = vadd.f32 %v2578, %v2579
    %v2581 = vrcp.pop %v2559
    %v2582 = vrcp.pop %v2566
    %v2583 = vrcp.pop %v2573
    %v2584 = vrcp.pop %v2580
    %v2585 = vmul.f32 %v2534, %v2581
    %v2586 = vmul.f32 %v2536, %v2582
    %v2587 = vmul.f32 %v2538, %v2583
    %v2588 = vmul.f32 %v2540, %v2584
    %v2589 = vmul.f32 %v2081, %v2585
    %v2590 = vmul.f32 %v2133, %v2586
    %v2591 = vmul.f32 %v2185, %v2587
    %v2592 = vmul.f32 %v2237, %v2588
    %v2597 = vrot.slane %v2589, 4
    %v2598 = vrot.slane %v2590, 4
    %v2599 = vrot.slane %v2591, 4
    %v2600 = vrot.slane %v2592, 4
    %v2605 = vsel %vm2252, %v2597, 0.0
    %v2606 = vrot.slane %v2605, 4
    %v2607 = vadd.f32 %v2605, %v2606
    %v2608 = vrot.slane %v2607, 2
    %v2609 = vadd.f32 %v2607, %v2608
    %v2610 = vrot.slane %v2609, 1
    %v2611 = vadd.f32 %v2609, %v2610
    %v2612 = vsel %vm2252, %v2598, 0.0
    %v2613 = vrot.slane %v2612, 4
    %v2614 = vadd.f32 %v2612, %v2613
    %v2615 = vrot.slane %v2614, 2
    %v2616 = vadd.f32 %v2614, %v2615
    %v2617 = vrot.slane %v2616, 1
    %v2618 = vadd.f32 %v2616, %v2617
    %v2619 = vsel %vm2252, %v2599, 0.0
    %v2620 = vrot.slane %v2619, 4
    %v2621 = vadd.f32 %v2619, %v2620
    %v2622 = vrot.slane %v2621, 2
    %v2623 = vadd.f32 %v2621, %v2622
    %v2624 = vrot.slane %v2623, 1
    %v2625 = vadd.f32 %v2623, %v2624
    %v2626 = vsel %vm2252, %v2600, 0.0
    %v2627 = vrot.slane %v2626, 4
    %v2628 = vadd.f32 %v2626, %v2627
    %v2629 = vrot.slane %v2628, 2
    %v2630 = vadd.f32 %v2628, %v2629
    %v2631 = vrot.slane %v2630, 1
    %v2632 = vadd.f32 %v2630, %v2631
    %v2637 = vrot.slane %v2618, 7
    %v2638 = vrot.slane %v2625, 6
    %v2639 = vrot.slane %v2632, 5
    %v2640 = vsel %vm2368, %v2611, %v2637
    %v2641 = vsel %vm2370, %v2638, %v2639
    %v2642 = vsel %vm2372, %v2640, %v2641
    %s2644 = scalar_lea.vmem [#allocation6], 1
    %2645 = vst.msk [vmem:[%s2644] ss:$2 sm:$0xf] %vm2378, %v2642
    %v2646 = vmul.f32 %v2410, %v2585
    %v2647 = vmul.f32 %v2425, %v2586
    %v2648 = vmul.f32 %v2440, %v2587
    %v2649 = vmul.f32 %v2455, %v2588
    %v2654 = vrot.slane %v2646, 4
    %v2655 = vrot.slane %v2647, 4
    %v2656 = vrot.slane %v2648, 4
    %v2657 = vrot.slane %v2649, 4
    %v2662 = vsel %vm2252, %v2654, 0.0
    %v2663 = vrot.slane %v2662, 4
    %v2664 = vadd.f32 %v2662, %v2663
    %v2665 = vrot.slane %v2664, 2
    %v2666 = vadd.f32 %v2664, %v2665
    %v2667 = vrot.slane %v2666, 1
    %v2668 = vadd.f32 %v2666, %v2667
    %v2669 = vsel %vm2252, %v2655, 0.0
    %v2670 = vrot.slane %v2669, 4
    %v2671 = vadd.f32 %v2669, %v2670
    %v2672 = vrot.slane %v2671, 2
    %v2673 = vadd.f32 %v2671, %v2672
    %v2674 = vrot.slane %v2673, 1
    %v2675 = vadd.f32 %v2673, %v2674
    %v2676 = vsel %vm2252, %v2656, 0.0
    %v2677 = vrot.slane %v2676, 4
    %v2678 = vadd.f32 %v2676, %v2677
    %v2679 = vrot.slane %v2678, 2
    %v2680 = vadd.f32 %v2678, %v2679
    %v2681 = vrot.slane %v2680, 1
    %v2682 = vadd.f32 %v2680, %v2681
    %v2683 = vsel %vm2252, %v2657, 0.0
    %v2684 = vrot.slane %v2683, 4
    %v2685 = vadd.f32 %v2683, %v2684
    %v2686 = vrot.slane %v2685, 2
    %v2687 = vadd.f32 %v2685, %v2686
    %v2688 = vrot.slane %v2687, 1
    %v2689 = vadd.f32 %v2687, %v2688
    %v2694 = vrot.slane %v2675, 7
    %v2695 = vrot.slane %v2682, 6
    %v2696 = vrot.slane %v2689, 5
    %v2697 = vsel %vm2368, %v2668, %v2694
    %v2698 = vsel %vm2370, %v2695, %v2696
    %v2699 = vsel %vm2372, %v2697, %v2698
    %s2701 = scalar_lea.vmem [#allocation7], 1
    %2702 = vst.msk [vmem:[%s2701] ss:$2 sm:$0xf] %vm2378, %v2699
    // Predicated region
    $region30: #{att_model_forward.1} parent=1 // pred_check
      _
    $region31: #{att_model_forward.1} parent=1 // pred_check_branch
      %2704 = sbr.rel (0) target = $region33
    $region32: #{att_model_forward.1} parent=1 // pred_region
      %2706 = vsyncadd [#allocation5], 0
      %s2708 = sshll.u32 [#allocation6], 4
      %s2709 = int_to_ptr.vmem [resolvable:$true] %s2708
      %s2710 = sshll.u32 %s6, 4
      %s2711 = int_to_ptr.hbm [resolvable:$true] %s2710
      %2713 = dma.vmem_to_hbm [thread:$0]  %s2709, 128, %s2711, [#allocation5]
    $region33: #{att_model_forward.1} parent=1 // pred_fallthru
      _
    // Predicated region
    $region34: #{att_model_forward.1} parent=1 // pred_check
      _
    $region35: #{att_model_forward.1} parent=1 // pred_check_branch
      %2715 = sbr.rel (0) target = $region37
    $region36: #{att_model_forward.1} parent=1 // pred_region
      %2717 = vsyncadd [#allocation8], 0
      %s2719 = sshll.u32 [#allocation7], 4
      %s2720 = int_to_ptr.vmem [resolvable:$true] %s2719
      %s2721 = sshll.u32 %s7, 4
      %s2722 = int_to_ptr.hbm [resolvable:$true] %s2721
      %2724 = dma.vmem_to_hbm [thread:$0]  %s2720, 128, %s2722, [#allocation8]
    $region37: #{att_model_forward.1} parent=1 // pred_fallthru
      _
    // Predicated region
    $region38: #{att_model_forward.1} parent=1 // pred_check
      _
    $region39: #{att_model_forward.1} parent=1 // pred_check_branch
      %2726 = sbr.rel (0) target = $region41
    $region40: #{att_model_forward.1} parent=1 // pred_region
      _
    $region41: #{att_model_forward.1} parent=1 // pred_fallthru
      _
    // Predicated region
    $region42: #{att_model_forward.1} parent=1 // pred_check
      _
    $region43: #{att_model_forward.1} parent=1 // pred_check_branch
      %2728 = sbr.rel (0) target = $region45
    $region44: #{att_model_forward.1} parent=1 // pred_region
      _
    $region45: #{att_model_forward.1} parent=1 // pred_fallthru
      _
    // Predicated region
    $region46: #{att_model_forward.1} parent=1 // pred_check
      _
    $region47: #{att_model_forward.1} parent=1 // pred_check_branch
      %2730 = sbr.rel (0) target = $region49
    $region48: #{att_model_forward.1} parent=1 // pred_region
      %2732 = dma.done [#allocation5], 128
    $region49: #{att_model_forward.1} parent=1 // pred_fallthru
      _
    // Predicated region
    $region50: #{att_model_forward.1} parent=1 // pred_check
      _
    $region51: #{att_model_forward.1} parent=1 // pred_check_branch
      %2734 = sbr.rel (0) target = $region53
    $region52: #{att_model_forward.1} parent=1 // pred_region
      %2736 = dma.done [#allocation8], 128
    $region53: #{att_model_forward.1} parent=1 // pred_fallthru
      _
    // Predicated region
    $region54: #{att_model_forward.1} parent=1 // pred_check
      _
    $region55: #{att_model_forward.1} parent=1 // pred_check_branch
      %2738 = sbr.rel (0) target = $region57
    $region56: #{att_model_forward.1} parent=1 // pred_region
      _
    $region57: #{att_model_forward.1} parent=1 // pred_fallthru
      _
    // Predicated region
    $region58: #{att_model_forward.1} parent=1 // pred_check
      _
    $region59: #{att_model_forward.1} parent=1 // pred_check_branch
      %2740 = sbr.rel (0) target = $region61
    $region60: #{att_model_forward.1} parent=1 // pred_region
      _
    $region61: #{att_model_forward.1} parent=1 // pred_fallthru
      _
    %2741 = vsyncpa [#allocation4], 1
    %2742 = vsyncpa [#allocation5], 1
    %2743 = vsyncpa [#allocation8], 1

</llo_original>
